<compile_context>
chip_gen: v7x
topology: tpu7x:2x2x1
jax: 0.10.0
libtpu: 0.0.40
codegen_flags: <defaults>
</compile_context>

<pallas_src>
import functools
import math

import jax
import jax.numpy as jnp
from jax import lax
from jax.experimental import pallas as pl
from jax.experimental.pallas import tpu as pltpu

LN_EPS = 1e-5
# Finite sentinel; safe because every causal row has >= 1 valid key (its own position).
# If key-padding / fully-masked rows are ever added, use a guarded softmax instead.
NEG_INF = -1e30


def _layernorm(v, gamma, beta):
    # PyTorch LayerNorm: biased variance, eps inside the sqrt. f32 math on the VPU/EUP.
    mu = jnp.mean(v, axis=-1, keepdims=True)
    var = jnp.mean((v - mu) * (v - mu), axis=-1, keepdims=True)
    return (v - mu) * lax.rsqrt(var + LN_EPS) * gamma + beta


# ---------------------------------------------------------------------------
# Kernel 1: ln1 + Q/K/V projection (computed once per token).
# ---------------------------------------------------------------------------
def qkv_proj_kernel(x_ref, ln1_g_ref, ln1_b_ref,
                    wq_ref, wk_ref, wv_ref, bq_ref, bk_ref, bv_ref,
                    q_ref, k_ref, v_ref):
    cdt = wq_ref.dtype                        # MXU operand dtype; accumulation f32
    x = x_ref[0]                              # (BT, E) f32
    nx = _layernorm(x, ln1_g_ref[...], ln1_b_ref[...]).astype(cdt)
    # Weights are pre-transposed (input-major): no .T in the kernel. wq/bq are pre-scaled
    # by 1/sqrt(Dh) in the wrapper, so no per-step scale multiply here.
    q = jnp.dot(nx, wq_ref[...], preferred_element_type=jnp.float32) + bq_ref[...]
    k = jnp.dot(nx, wk_ref[...], preferred_element_type=jnp.float32) + bk_ref[...]
    v = jnp.dot(nx, wv_ref[...], preferred_element_type=jnp.float32) + bv_ref[...]
    q_ref[0] = q.astype(q_ref.dtype)
    k_ref[0] = k.astype(k_ref.dtype)
    v_ref[0] = v.astype(v_ref.dtype)


# ---------------------------------------------------------------------------
# Kernel 2: causal flash attention (online softmax over KV tiles) + out-proj +
#           residual + ln2 + GELU MLP + residual.
# ---------------------------------------------------------------------------
def attn_mlp_kernel(x_ref, q_ref, k_ref, v_ref,
                    wo_ref, bo_ref, ln2_g_ref, ln2_b_ref,
                    w1_ref, b1_ref, w2_ref, b2_ref,
                    o_ref,
                    m_scr, l_scr, acc_scr,
                    *, block_q: int, block_kv: int, recip_approx: bool):
    cdt = w1_ref.dtype
    q_idx = pl.program_id(1)
    kv_idx = pl.program_id(2)
    n_kv = pl.num_programs(2)
    # Last KV block that intersects the causal triangle for this query tile.
    kv_last = ((q_idx + 1) * block_q - 1) // block_kv

    @pl.when(kv_idx == 0)
    def _init():
        m_scr[...] = jnp.full_like(m_scr, NEG_INF)
        l_scr[...] = jnp.zeros_like(l_scr)
        acc_scr[...] = jnp.zeros_like(acc_scr)

    @pl.when(kv_idx <= kv_last)               # skip fully-masked (future) KV blocks
    def _compute():
        q = q_ref[0]                          # (H, BQ, Dh)
        k = k_ref[0]                          # (H, BKV, Dh)
        v = v_ref[0]                          # (H, BKV, Dh)
        s = jnp.einsum("hqd,hkd->hqk", q, k,
                       preferred_element_type=jnp.float32)          # (H, BQ, BKV) f32
        # Fused causal mask (no mask tensor materialized in HBM).
        q_pos = q_idx * block_q + lax.broadcasted_iota(jnp.int32, (block_q, block_kv), 0)
        k_pos = kv_idx * block_kv + lax.broadcasted_iota(jnp.int32, (block_q, block_kv), 1)
        causal = (q_pos >= k_pos)[None, :, :]
        s = jnp.where(causal, s, NEG_INF)

        m_prev = m_scr[...]                                          # (H, BQ, 1)
        m_new = jnp.maximum(m_prev, jnp.max(s, axis=-1, keepdims=True))
        alpha = jnp.exp(m_prev - m_new)
        p = jnp.exp(s - m_new)
        l_scr[...] = alpha * l_scr[...] + jnp.sum(p, axis=-1, keepdims=True)
        acc_scr[...] = alpha * acc_scr[...] + jnp.einsum(
            "hqk,hkd->hqd", p.astype(cdt), v, preferred_element_type=jnp.float32)
        m_scr[...] = m_new

    @pl.when(kv_idx == n_kv - 1)
    def _finalize():
        n_head = acc_scr.shape[0]
        E = o_ref.shape[-1]

        # Out-projection accumulated per head into a lane-dense (BQ, E) f32 value
        # (avoids Dh-wide partial stores into a per-head scratch slab).
        def head_body(h, acc_o):
            inv_l = pl.reciprocal(l_scr[h], approx=recip_approx)     # (BQ, 1)
            o_h = (acc_scr[h] * inv_l).astype(cdt)                    # (BQ, Dh)
            return acc_o + jnp.dot(o_h, wo_ref[h],
                                   preferred_element_type=jnp.float32)

        acc_o = lax.fori_loop(0, n_head, head_body,
                              jnp.zeros((block_q, E), jnp.float32), unroll=True)
        attn = acc_o + bo_ref[...]

        x = x_ref[0]                                                  # (BQ, E) f32
        x1 = x + attn                                                 # residual 1
        n2 = _layernorm(x1, ln2_g_ref[...], ln2_b_ref[...])
        h1 = jnp.dot(n2.astype(cdt), w1_ref[...],
                     preferred_element_type=jnp.float32) + b1_ref[...]
        g = 0.5 * h1 * (1.0 + lax.erf(h1 * (1.0 / math.sqrt(2.0))))   # exact GELU, f32
        ff = jnp.dot(g.astype(cdt), w2_ref[...],
                     preferred_element_type=jnp.float32) + b2_ref[...]
        o_ref[0] = (x1 + ff).astype(o_ref.dtype)                      # residual 2


# ---------------------------------------------------------------------------
# Wrapper
# ---------------------------------------------------------------------------
def _vmem_budget_bytes():
    """Generation-aware scoped-VMEM budget (~80% of physical, min 32 MiB)."""
    try:
        info = pltpu.get_tpu_info()
        phys = int(getattr(info, "vmem_capacity_bytes", 0)) or (64 << 20)
    except Exception:
        phys = 64 << 20
    return max(32 << 20, int(phys * 0.8))


def decoder_block(x, params, *, n_head: int, block_q: int = None, block_kv: int = None,
                  block_t: int = None, compute_dtype=jnp.bfloat16,
                  single_buffer_weights: bool = False):
    B, T, E = x.shape
    assert E % n_head == 0
    Dh = E // n_head
    if block_q is None:
        block_q = min(T, 256)
    if block_kv is None:
        block_kv = min(T, 512)
    if block_t is None:
        block_t = min(T, 256)
    assert T % block_q == 0 and T % block_kv == 0 and T % block_t == 0
    assert block_q % 8 == 0 and block_kv % 8 == 0 and block_t % 8 == 0
    n_inner = params["w1"].shape[1]

    cdt = jnp.dtype(compute_dtype)
    cs = cdt.itemsize
    # Approx (EUP) reciprocal only when operands are already low precision (bf16).
    recip_approx = (cdt != jnp.dtype(jnp.float32))
    scale = 1.0 / math.sqrt(Dh)

    # Matmul weights in the MXU compute dtype; biases / LN params stay f32.
    # The attention scale is folded into wq/bq (one-time, wrapper-side).
    wq = (params["wq"] * scale).astype(cdt)
    bq = params["bq"] * scale
    wk = params["wk"].astype(cdt)
    wv = params["wv"].astype(cdt)
    wo_h = params["wo"].astype(cdt).reshape(n_head, Dh, E)   # per-head (Dh, E) slices
    w1 = params["w1"].astype(cdt)
    w2 = params["w2"].astype(cdt)

    vmem_budget = _vmem_budget_bytes()
    # Optional single-buffered constant weights (v7x VMEM-tight configurations).
    weight_mode = pl.Buffered(1) if single_buffer_weights else None

    def const_spec(p, n_axes):
        nd = p.ndim
        if n_axes == 2:
            idx = lambda b, t, _nd=nd: (0,) * _nd
        else:
            idx = lambda b, q, kv, _nd=nd: (0,) * _nd
        if weight_mode is None:
            return pl.BlockSpec(p.shape, idx)
        return pl.BlockSpec(p.shape, idx, pipeline_mode=weight_mode)

    # ------------------------- Kernel 1: ln1 + QKV projection -------------------------
    proj_params = [params["ln1_g"], params["ln1_b"], wq, wk, wv, bq, params["bk"], params["bv"]]
    proj_weight_bytes = sum(int(p.size) * p.dtype.itemsize for p in proj_params)
    n_t = T // block_t

    proj_cost = pl.CostEstimate(
        flops=int(6 * B * T * E * E),
        transcendentals=int(B * T),
        bytes_accessed=int(B * T * E * 4 + 3 * B * T * E * cs + B * proj_weight_bytes),
    )
    proj_vmem_est = 2 * (block_t * E * 4 + 3 * block_t * E * cs) + 2 * proj_weight_bytes + (4 << 20)
    proj_vmem = int(min(max(proj_vmem_est, 32 << 20), vmem_budget))

    q_flat, k_flat, v_flat = pl.pallas_call(
        qkv_proj_kernel,
        out_shape=tuple(jax.ShapeDtypeStruct((B, T, E), cdt) for _ in range(3)),
        grid_spec=pltpu.PrefetchScalarGridSpec(
            num_scalar_prefetch=0,
            grid=(B, n_t),
            in_specs=[pl.BlockSpec((1, block_t, E), lambda b, t: (b, t, 0))]
                     + [const_spec(p, 2) for p in proj_params],
            out_specs=tuple(pl.BlockSpec((1, block_t, E), lambda b, t: (b, t, 0))
                            for _ in range(3)),
        ),
        compiler_params=pltpu.CompilerParams(
            dimension_semantics=("parallel", "parallel"),
            vmem_limit_bytes=proj_vmem),
        cost_estimate=proj_cost,
    )(x, *proj_params)

    # Wrapper-side relayout (layout plumbing): head-major (B, H, T, Dh) so attention blocks
    # have a full last dim (Dh) and 8-aligned sublanes.
    def split_heads(t):
        return t.reshape(B, T, n_head, Dh).transpose(0, 2, 1, 3)

    qh, kh, vh = split_heads(q_flat), split_heads(k_flat), split_heads(v_flat)

    # ------------------------- Kernel 2: attention + MLP -------------------------
    n_q = T // block_q
    n_kv = T // block_kv

    def kv_map(b, q, kv):
        # Clamp to the last causally-needed KV block so skipped steps re-request the same
        # block (refetch elided -> no wasted DMA).
        kv_last = ((q + 1) * block_q - 1) // block_kv
        return (b, 0, jnp.minimum(kv, kv_last), 0)

    attn_params = [wo_h, params["bo"], params["ln2_g"], params["ln2_b"],
                   w1, params["b1"], w2, params["b2"]]
    attn_weight_bytes = sum(int(p.size) * p.dtype.itemsize for p in attn_params)

    in_specs = ([pl.BlockSpec((1, block_q, E), lambda b, q, kv: (b, q, 0)),          # x (residual)
                 pl.BlockSpec((1, n_head, block_q, Dh), lambda b, q, kv: (b, 0, q, 0)),
                 pl.BlockSpec((1, n_head, block_kv, Dh), kv_map),
                 pl.BlockSpec((1, n_head, block_kv, Dh), kv_map)]
                + [const_spec(p, 3) for p in attn_params])
    out_specs = pl.BlockSpec((1, block_q, E), lambda b, q, kv: (b, q, 0))

    scratch = [pltpu.VMEM((n_head, block_q, 1), jnp.float32),     # m
               pltpu.VMEM((n_head, block_q, 1), jnp.float32),     # l
               pltpu.VMEM((n_head, block_q, Dh), jnp.float32)]    # acc

    causal_frac = (n_kv + 1) / (2.0 * n_kv)
    attn_cost = pl.CostEstimate(
        flops=int(B * (4 * T * T * E * causal_frac + 2 * T * E * E + 4 * T * E * n_inner)),
        transcendentals=int(B * (n_head * T * T * causal_frac + T * n_inner)),
        bytes_accessed=int(B * T * E * 4 + B * T * E * cs
                           + 2 * B * n_q * T * E * cs * causal_frac
                           + B * T * E * 4
                           + B * attn_weight_bytes),   # constant-block refetch elided
    )
    act_bytes = (block_q * E * 4 + block_q * E * cs + 2 * block_kv * E * cs + block_q * E * 4)
    scratch_bytes = n_head * block_q * (2 + Dh) * 4
    attn_vmem_est = 2 * act_bytes + 2 * attn_weight_bytes + scratch_bytes + (4 << 20)
    attn_vmem = int(min(max(attn_vmem_est, 32 << 20), vmem_budget))

    kernel = functools.partial(attn_mlp_kernel, block_q=block_q, block_kv=block_kv,
                               recip_approx=recip_approx)

    return pl.pallas_call(
        kernel,
        out_shape=jax.ShapeDtypeStruct((B, T, E), x.dtype),
        grid_spec=pltpu.PrefetchScalarGridSpec(
            num_scalar_prefetch=0,
            grid=(B, n_q, n_kv),
            in_specs=in_specs,
            out_specs=out_specs,
            scratch_shapes=scratch),
        compiler_params=pltpu.CompilerParams(
            dimension_semantics=("parallel", "parallel", "arbitrary"),
            vmem_limit_bytes=attn_vmem),
        cost_estimate=attn_cost,
    )(x, qh, kh, vh, *attn_params)


def init_params(key, n_embd, n_inner):
    E = n_embd
    ks = jax.random.split(key, 9)
    s = 0.02
    # Weights stored input-major (transpose of PyTorch Linear/MHA layout): act @ W.
    return {
        "ln1_g": jnp.ones((1, E), jnp.float32),
        "ln1_b": jnp.zeros((1, E), jnp.float32),
        "wq": s * jax.random.normal(ks[0], (E, E), jnp.float32),
        "wk": s * jax.random.normal(ks[1], (E, E), jnp.float32),
        "wv": s * jax.random.normal(ks[2], (E, E), jnp.float32),
        "bq": s * jax.random.normal(ks[3], (1, E), jnp.float32),
        "bk": jnp.zeros((1, E), jnp.float32),
        "bv": s * jax.random.normal(ks[4], (1, E), jnp.float32),
        "wo": s * jax.random.normal(ks[5], (E, E), jnp.float32),
        "bo": jnp.zeros((1, E), jnp.float32),
        "ln2_g": jnp.ones((1, E), jnp.float32),
        "ln2_b": jnp.zeros((1, E), jnp.float32),
        "w1": s * jax.random.normal(ks[6], (E, n_inner), jnp.float32),
        "b1": s * jax.random.normal(ks[7], (1, n_inner), jnp.float32),
        "w2": s * jax.random.normal(ks[8], (n_inner, E), jnp.float32),
        "b2": jnp.zeros((1, E), jnp.float32),
    }


def reference(x, p, n_head):
    """Plain-JAX f32 reference (matches the PyTorch DecoderBlock forward in eval mode)."""
    B, T, E = x.shape
    Dh = E // n_head

    def ln(v, g, b):
        mu = v.mean(-1, keepdims=True)
        var = ((v - mu) ** 2).mean(-1, keepdims=True)
        return (v - mu) / jnp.sqrt(var + LN_EPS) * g + b

    nx = ln(x, p["ln1_g"], p["ln1_b"])
    q = nx @ p["wq"] + p["bq"]
    k = nx @ p["wk"] + p["bk"]
    v = nx @ p["wv"] + p["bv"]

    def split(t):  # (B,T,E) -> (B,H,T,Dh)
        return t.reshape(B, T, n_head, Dh).transpose(0, 2, 1, 3)

    qh, kh, vh = split(q), split(k), split(v)
    mask = jnp.where(jnp.tril(jnp.ones((T, T))) == 0, -jnp.inf, 0.0)
    s = jnp.einsum("bhqd,bhkd->bhqk", qh, kh) / math.sqrt(Dh) + mask
    pr = jax.nn.softmax(s, axis=-1)
    o = jnp.einsum("bhqk,bhkd->bhqd", pr, vh).transpose(0, 2, 1, 3).reshape(B, T, E)
    attn = o @ p["wo"] + p["bo"]
    x1 = x + attn
    n2 = ln(x1, p["ln2_g"], p["ln2_b"])
    h1 = n2 @ p["w1"] + p["b1"]
    g = 0.5 * h1 * (1.0 + lax.erf(h1 / math.sqrt(2.0)))
    ff = g @ p["w2"] + p["b2"]
    return x1 + ff


if __name__ == "__main__":
    # Small but lane-dense shapes (E, n_inner multiples of 128); T=256 with 128-blocks
    # exercises the KV tiling, online softmax and causal block-skipping paths.
    B, T, E, H, INNER = 2, 256, 128, 4, 256
    BLOCK_Q, BLOCK_KV = 128, 128

    key = jax.random.PRNGKey(0)
    kx, kp = jax.random.split(key)
    x = jax.random.normal(kx, (B, T, E), jnp.float32)
    params = init_params(kp, E, INNER)

    ref = reference(x, params, H)

    # f32 MXU path (exact softmax reciprocal) — tight numerical check.
    out_f32 = jax.block_until_ready(
        decoder_block(x, params, n_head=H, block_q=BLOCK_Q, block_kv=BLOCK_KV,
                      compute_dtype=jnp.float32))
    assert out_f32.shape == (B, T, E)
    err32 = float(jnp.max(jnp.abs(out_f32 - ref)))
    assert jnp.allclose(out_f32, ref, atol=2e-3, rtol=2e-3), err32

    # bf16 MXU operands (f32 accumulation) — the performance configuration.
    out_bf16 = jax.block_until_ready(
        decoder_block(x, params, n_head=H, block_q=BLOCK_Q, block_kv=BLOCK_KV,
                      compute_dtype=jnp.bfloat16))
    errbf = float(jnp.max(jnp.abs(out_bf16 - ref)))
    assert jnp.allclose(out_bf16, ref, atol=5e-2, rtol=5e-2), errbf

    print("KERNEL_OK")
</pallas_src>

<mosaic_0001>
module attributes {stable_mosaic.version = 11 : i64} {
  func.func @qkv_proj_kernel(%arg0: i32, %arg1: i32, %arg2: memref<1x256x128xf32, #tpu.memory_space<vmem>>, %arg3: memref<1x128xf32, #tpu.memory_space<vmem>>, %arg4: memref<1x128xf32, #tpu.memory_space<vmem>>, %arg5: memref<128x128xf32, #tpu.memory_space<vmem>>, %arg6: memref<128x128xf32, #tpu.memory_space<vmem>>, %arg7: memref<128x128xf32, #tpu.memory_space<vmem>>, %arg8: memref<1x128xf32, #tpu.memory_space<vmem>>, %arg9: memref<1x128xf32, #tpu.memory_space<vmem>>, %arg10: memref<1x128xf32, #tpu.memory_space<vmem>>, %arg11: memref<1x256x128xf32, #tpu.memory_space<vmem>>, %arg12: memref<1x256x128xf32, #tpu.memory_space<vmem>>, %arg13: memref<1x256x128xf32, #tpu.memory_space<vmem>>) attributes {dimension_semantics = [#tpu.dimension_semantics<parallel>, #tpu.dimension_semantics<parallel>], iteration_bounds = array<i64: 2, 1>, scalar_prefetch = 0 : i64, scratch_operands = 0 : i64, tpu.core_type = #tpu.core_type<tc>, window_params = [{transform_indices = @transform_0, window_bounds = array<i64: 1, 256, 128>}, {pipeline_mode = #tpu.pipeline_mode<synchronous>, transform_indices = @transform_1, window_bounds = array<i64: 1, 128>}, {pipeline_mode = #tpu.pipeline_mode<synchronous>, transform_indices = @transform_2, window_bounds = array<i64: 1, 128>}, {pipeline_mode = #tpu.pipeline_mode<synchronous>, transform_indices = @transform_3, window_bounds = array<i64: 128, 128>}, {pipeline_mode = #tpu.pipeline_mode<synchronous>, transform_indices = @transform_4, window_bounds = array<i64: 128, 128>}, {pipeline_mode = #tpu.pipeline_mode<synchronous>, transform_indices = @transform_5, window_bounds = array<i64: 128, 128>}, {pipeline_mode = #tpu.pipeline_mode<synchronous>, transform_indices = @transform_6, window_bounds = array<i64: 1, 128>}, {pipeline_mode = #tpu.pipeline_mode<synchronous>, transform_indices = @transform_7, window_bounds = array<i64: 1, 128>}, {pipeline_mode = #tpu.pipeline_mode<synchronous>, transform_indices = @transform_8, window_bounds = array<i64: 1, 128>}, {transform_indices = @transform_9, window_bounds = array<i64: 1, 256, 128>}, {transform_indices = @transform_10, window_bounds = array<i64: 1, 256, 128>}, {transform_indices = @transform_11, window_bounds = array<i64: 1, 256, 128>}]} {
    %c0 = arith.constant 0 : index
    %c0_0 = arith.constant 0 : index
    %c0_1 = arith.constant 0 : index
    %0 = vector.load %arg2[%c0, %c0_0, %c0_1] : memref<1x256x128xf32, #tpu.memory_space<vmem>>, vector<1x256x128xf32>
    %1 = vector.shape_cast %0 : vector<1x256x128xf32> to vector<256x128xf32>
    %c0_2 = arith.constant 0 : index
    %c0_3 = arith.constant 0 : index
    %2 = vector.load %arg3[%c0_2, %c0_3] : memref<1x128xf32, #tpu.memory_space<vmem>>, vector<1x128xf32>
    %c0_4 = arith.constant 0 : index
    %c0_5 = arith.constant 0 : index
    %3 = vector.load %arg4[%c0_4, %c0_5] : memref<1x128xf32, #tpu.memory_space<vmem>>, vector<1x128xf32>
    %cst = arith.constant dense<0.000000e+00> : vector<256xf32>
    %4 = vector.multi_reduction <add>, %1, %cst [1] : vector<256x128xf32> to vector<256xf32>
    %5 = vector.shape_cast %4 : vector<256xf32> to vector<256x1xf32>
    %cst_6 = arith.constant 1.280000e+02 : f32
    %6 = vector.broadcast %cst_6 : f32 to vector<256x1xf32>
    %7 = arith.divf %5, %6 : vector<256x1xf32>
    %8 = vector.broadcast %7 : vector<256x1xf32> to vector<256x128xf32>
    %9 = arith.subf %1, %8 : vector<256x128xf32>
    %10 = vector.broadcast %7 : vector<256x1xf32> to vector<256x128xf32>
    %11 = arith.subf %1, %10 : vector<256x128xf32>
    %12 = arith.mulf %9, %11 : vector<256x128xf32>
    %cst_7 = arith.constant dense<0.000000e+00> : vector<256xf32>
    %13 = vector.multi_reduction <add>, %12, %cst_7 [1] : vector<256x128xf32> to vector<256xf32>
    %14 = vector.shape_cast %13 : vector<256xf32> to vector<256x1xf32>
    %cst_8 = arith.constant 1.280000e+02 : f32
    %15 = vector.broadcast %cst_8 : f32 to vector<256x1xf32>
    %16 = arith.divf %14, %15 : vector<256x1xf32>
    %17 = vector.broadcast %7 : vector<256x1xf32> to vector<256x128xf32>
    %18 = arith.subf %1, %17 : vector<256x128xf32>
    %cst_9 = arith.constant 9.99999974E-6 : f32
    %19 = vector.broadcast %cst_9 : f32 to vector<256x1xf32>
    %20 = arith.addf %16, %19 : vector<256x1xf32>
    %21 = math.rsqrt %20 : vector<256x1xf32>
    %22 = vector.broadcast %21 : vector<256x1xf32> to vector<256x128xf32>
    %23 = arith.mulf %18, %22 : vector<256x128xf32>
    %24 = vector.broadcast %2 : vector<1x128xf32> to vector<256x128xf32>
    %25 = arith.mulf %23, %24 : vector<256x128xf32>
    %26 = vector.broadcast %3 : vector<1x128xf32> to vector<256x128xf32>
    %27 = arith.addf %25, %26 : vector<256x128xf32>
    %c0_10 = arith.constant 0 : index
    %c0_11 = arith.constant 0 : index
    %28 = vector.load %arg5[%c0_10, %c0_11] : memref<128x128xf32, #tpu.memory_space<vmem>>, vector<128x128xf32>
    %cst_12 = arith.constant dense<0.000000e+00> : vector<256x128xf32>
    %29 = tpu.matmul %27, %28, %cst_12 {dimension_numbers = #tpu.dot_dimension_numbers<[1], [0], [0], [1], [0, 0, 1, 1], [], []>} : vector<256x128xf32>, vector<128x128xf32>, vector<256x128xf32> -> vector<256x128xf32>
    %c0_13 = arith.constant 0 : index
    %c0_14 = arith.constant 0 : index
    %30 = vector.load %arg8[%c0_13, %c0_14] : memref<1x128xf32, #tpu.memory_space<vmem>>, vector<1x128xf32>
    %31 = vector.broadcast %30 : vector<1x128xf32> to vector<256x128xf32>
    %32 = arith.addf %29, %31 : vector<256x128xf32>
    %c0_15 = arith.constant 0 : index
    %c0_16 = arith.constant 0 : index
    %33 = vector.load %arg6[%c0_15, %c0_16] : memref<128x128xf32, #tpu.memory_space<vmem>>, vector<128x128xf32>
    %cst_17 = arith.constant dense<0.000000e+00> : vector<256x128xf32>
    %34 = tpu.matmul %27, %33, %cst_17 {dimension_numbers = #tpu.dot_dimension_numbers<[1], [0], [0], [1], [0, 0, 1, 1], [], []>} : vector<256x128xf32>, vector<128x128xf32>, vector<256x128xf32> -> vector<256x128xf32>
    %c0_18 = arith.constant 0 : index
    %c0_19 = arith.constant 0 : index
    %35 = vector.load %arg9[%c0_18, %c0_19] : memref<1x128xf32, #tpu.memory_space<vmem>>, vector<1x128xf32>
    %36 = vector.broadcast %35 : vector<1x128xf32> to vector<256x128xf32>
    %37 = arith.addf %34, %36 : vector<256x128xf32>
    %c0_20 = arith.constant 0 : index
    %c0_21 = arith.constant 0 : index
    %38 = vector.load %arg7[%c0_20, %c0_21] : memref<128x128xf32, #tpu.memory_space<vmem>>, vector<128x128xf32>
    %cst_22 = arith.constant dense<0.000000e+00> : vector<256x128xf32>
    %39 = tpu.matmul %27, %38, %cst_22 {dimension_numbers = #tpu.dot_dimension_numbers<[1], [0], [0], [1], [0, 0, 1, 1], [], []>} : vector<256x128xf32>, vector<128x128xf32>, vector<256x128xf32> -> vector<256x128xf32>
    %c0_23 = arith.constant 0 : index
    %c0_24 = arith.constant 0 : index
    %40 = vector.load %arg10[%c0_23, %c0_24] : memref<1x128xf32, #tpu.memory_space<vmem>>, vector<1x128xf32>
    %41 = vector.broadcast %40 : vector<1x128xf32> to vector<256x128xf32>
    %42 = arith.addf %39, %41 : vector<256x128xf32>
    %c0_25 = arith.constant 0 : index
    %c0_26 = arith.constant 0 : index
    %c0_27 = arith.constant 0 : index
    %43 = vector.load %arg11[%c0_25, %c0_26, %c0_27] : memref<1x256x128xf32, #tpu.memory_space<vmem>>, vector<1x256x128xf32>
    %44 = vector.shape_cast %43 : vector<1x256x128xf32> to vector<256x128xf32>
    %45 = vector.shape_cast %32 : vector<256x128xf32> to vector<1x256x128xf32>
    tpu.vector_store %arg11[%c0_25, %c0_26, %c0_27], %45 {strides = array<i32>} : memref<1x256x128xf32, #tpu.memory_space<vmem>>, vector<1x256x128xf32>,
    %c0_28 = arith.constant 0 : index
    %c0_29 = arith.constant 0 : index
    %c0_30 = arith.constant 0 : index
    %46 = vector.load %arg12[%c0_28, %c0_29, %c0_30] : memref<1x256x128xf32, #tpu.memory_space<vmem>>, vector<1x256x128xf32>
    %47 = vector.shape_cast %46 : vector<1x256x128xf32> to vector<256x128xf32>
    %48 = vector.shape_cast %37 : vector<256x128xf32> to vector<1x256x128xf32>
    tpu.vector_store %arg12[%c0_28, %c0_29, %c0_30], %48 {strides = array<i32>} : memref<1x256x128xf32, #tpu.memory_space<vmem>>, vector<1x256x128xf32>,
    %c0_31 = arith.constant 0 : index
    %c0_32 = arith.constant 0 : index
    %c0_33 = arith.constant 0 : index
    %49 = vector.load %arg13[%c0_31, %c0_32, %c0_33] : memref<1x256x128xf32, #tpu.memory_space<vmem>>, vector<1x256x128xf32>
    %50 = vector.shape_cast %49 : vector<1x256x128xf32> to vector<256x128xf32>
    %51 = vector.shape_cast %42 : vector<256x128xf32> to vector<1x256x128xf32>
    tpu.vector_store %arg13[%c0_31, %c0_32, %c0_33], %51 {strides = array<i32>} : memref<1x256x128xf32, #tpu.memory_space<vmem>>, vector<1x256x128xf32>,
    return
  }
  func.func @transform_0(%arg0: i32, %arg1: i32) -> (i32, i32, i32) {
    %c0_i32 = arith.constant 0 : i32
    %c0_i32_0 = arith.constant 0 : i32
    return %arg0, %arg1, %c0_i32 : i32, i32, i32
  }
  func.func @transform_1(%arg0: i32, %arg1: i32) -> (i32, i32) {
    %c0_i32 = arith.constant 0 : i32
    %c0_i32_0 = arith.constant 0 : i32
    %c0_i32_1 = arith.constant 0 : i32
    return %c0_i32, %c0_i32_0 : i32, i32
  }
  func.func @transform_2(%arg0: i32, %arg1: i32) -> (i32, i32) {
    %c0_i32 = arith.constant 0 : i32
    %c0_i32_0 = arith.constant 0 : i32
    %c0_i32_1 = arith.constant 0 : i32
    return %c0_i32, %c0_i32_0 : i32, i32
  }
  func.func @transform_3(%arg0: i32, %arg1: i32) -> (i32, i32) {
    %c0_i32 = arith.constant 0 : i32
    %c0_i32_0 = arith.constant 0 : i32
    %c0_i32_1 = arith.constant 0 : i32
    return %c0_i32, %c0_i32_0 : i32, i32
  }
  func.func @transform_4(%arg0: i32, %arg1: i32) -> (i32, i32) {
    %c0_i32 = arith.constant 0 : i32
    %c0_i32_0 = arith.constant 0 : i32
    %c0_i32_1 = arith.constant 0 : i32
    return %c0_i32, %c0_i32_0 : i32, i32
  }
  func.func @transform_5(%arg0: i32, %arg1: i32) -> (i32, i32) {
    %c0_i32 = arith.constant 0 : i32
    %c0_i32_0 = arith.constant 0 : i32
    %c0_i32_1 = arith.constant 0 : i32
    return %c0_i32, %c0_i32_0 : i32, i32
  }
  func.func @transform_6(%arg0: i32, %arg1: i32) -> (i32, i32) {
    %c0_i32 = arith.constant 0 : i32
    %c0_i32_0 = arith.constant 0 : i32
    %c0_i32_1 = arith.constant 0 : i32
    return %c0_i32, %c0_i32_0 : i32, i32
  }
  func.func @transform_7(%arg0: i32, %arg1: i32) -> (i32, i32) {
    %c0_i32 = arith.constant 0 : i32
    %c0_i32_0 = arith.constant 0 : i32
    %c0_i32_1 = arith.constant 0 : i32
    return %c0_i32, %c0_i32_0 : i32, i32
  }
  func.func @transform_8(%arg0: i32, %arg1: i32) -> (i32, i32) {
    %c0_i32 = arith.constant 0 : i32
    %c0_i32_0 = arith.constant 0 : i32
    %c0_i32_1 = arith.constant 0 : i32
    return %c0_i32, %c0_i32_0 : i32, i32
  }
  func.func @transform_9(%arg0: i32, %arg1: i32) -> (i32, i32, i32) {
    %c0_i32 = arith.constant 0 : i32
    %c0_i32_0 = arith.constant 0 : i32
    return %arg0, %arg1, %c0_i32 : i32, i32, i32
  }
  func.func @transform_10(%arg0: i32, %arg1: i32) -> (i32, i32, i32) {
    %c0_i32 = arith.constant 0 : i32
    %c0_i32_0 = arith.constant 0 : i32
    return %arg0, %arg1, %c0_i32 : i32, i32, i32
  }
  func.func @transform_11(%arg0: i32, %arg1: i32) -> (i32, i32, i32) {
    %c0_i32 = arith.constant 0 : i32
    %c0_i32_0 = arith.constant 0 : i32
    return %arg0, %arg1, %c0_i32 : i32, i32, i32
  }
}

</mosaic_0001>

<llo_original>
// kernel: tpu_custom_call.1
$region0: #{tpu_custom_call.1}
  #allocation0 [shape = 'u32[]', space=smem, size = 0x4, offset = 0x4, fixed_abs, tag = 'smem constant byte address 0x4 - core index']
  #allocation1 [shape = 'u32[144,128]{1,0:T(1,128)}', space=vmem, size = 0x12000, scoped, tag = 'internal scratch']
  %s0 = inlined_call_operand.hbm [shape: f32[2,256,128], index: 0, kind: input, shape index: {}]
  %s1 = inlined_call_operand.vmem [shape: f32[1,128], index: 1, kind: input, shape index: {}]
  %s2 = inlined_call_operand.vmem [shape: f32[1,128], index: 2, kind: input, shape index: {}]
  %s3 = inlined_call_operand.hbm [shape: f32[128,128], index: 3, kind: input, shape index: {}]
  %s4 = inlined_call_operand.hbm [shape: f32[128,128], index: 4, kind: input, shape index: {}]
  %s5 = inlined_call_operand.hbm [shape: f32[128,128], index: 5, kind: input, shape index: {}]
  %s6 = inlined_call_operand.vmem [shape: f32[1,128], index: 6, kind: input, shape index: {}]
  %s7 = inlined_call_operand.vmem [shape: f32[1,128], index: 7, kind: input, shape index: {}]
  %s8 = inlined_call_operand.vmem [shape: f32[1,128], index: 8, kind: input, shape index: {}]
  %s9 = inlined_call_operand.hbm [shape: f32[2,256,128], index: 9, kind: output, shape index: {0}]
  %s10 = inlined_call_operand.hbm [shape: f32[2,256,128], index: 10, kind: output, shape index: {1}]
  %s11 = inlined_call_operand.hbm [shape: f32[2,256,128], index: 11, kind: output, shape index: {2}]
  %12 = xla_tuple %s9, %s10, %s11
  %s13 = sld [smem:[#allocation0]]
  $region101: #{tpu_custom_call.1} parent=0
    _
  %s15 = ssub.s32 1, %s13
  %s16 = scalar_select 0, %s15, %s13
  $region1: #{tpu_custom_call.1} parent=0
    #allocation2 [shape = 'u8[262144]{0}', space=vmem, size = 0x40000, scoped, tag = 'input window, operand 0']
    #allocation3 [shape = 's32[2]{0}', space=sflag, size = 0x8, scoped, tag = 'scoped memory for tpu_custom_call.1']
    #allocation4 [shape = 's32[2]{0}', space=sflag, size = 0x8, scoped, tag = 'scoped memory for tpu_custom_call.1']
    #allocation5 [shape = 'u8[65536]{0}', space=vmem, size = 0x10000, scoped, tag = 'input window, operand 3, single buffered']
    #allocation6 [shape = 's32[1]{0}', space=sflag, size = 0x4, scoped, tag = 'scoped memory for tpu_custom_call.1']
    #allocation7 [shape = 'u8[65536]{0}', space=vmem, size = 0x10000, scoped, tag = 'input window, operand 4, single buffered']
    #allocation8 [shape = 'u8[65536]{0}', space=vmem, size = 0x10000, scoped, tag = 'input window, operand 5, single buffered']
    #allocation9 [shape = 's32[1]{0}', space=sflag, size = 0x4, scoped, tag = 'scoped memory for tpu_custom_call.1']
    #allocation10 [shape = 'u8[262144]{0}', space=vmem, size = 0x40000, scoped, tag = 'output window, operand 0']
    #allocation11 [shape = 'u8[262144]{0}', space=vmem, size = 0x40000, scoped, tag = 'output window, operand 1']
    #allocation12 [shape = 's32[2]{0}', space=sflag, size = 0x8, scoped, tag = 'scoped memory for tpu_custom_call.1']
    #allocation13 [shape = 'u8[262144]{0}', space=vmem, size = 0x40000, scoped, tag = 'output window, operand 2']
    %17 = vsyncpa [#allocation3], 0
    %s18 = scalar_lea.sflag [#allocation3], 1
    %19 = vsyncpa %s18, 0
    %20 = vsyncpa [#allocation6], 0
    %21 = vsyncpa [#allocation9], 0
    %22 = vsyncpa [#allocation4], 0
    %s23 = scalar_lea.sflag [#allocation4], 1
    %24 = vsyncpa %s23, 0
    %25 = vsyncpa [#allocation12], 0
    %s26 = scalar_lea.sflag [#allocation12], 1
    %27 = vsyncpa %s26, 0
    loop: start=0, step=1, limit=4
    $region2: #{tpu_custom_call.1} parent=1 // loop_pre_header
      _
    $region3: #{tpu_custom_call.1} parent=1 // loop_header
      %s29 = sphi 0, %s33
      %p30 = scmp.ge.s32.totalorder %s29, 4
      %s36 = sphi 0, %s48
      %s37 = sphi 0, %s44
      %s38 = sphi 0, %s36
      %s39 = sphi 0, %s37
      %s40 = sphi 0, %s38
      %s41 = sphi 0, %s39
      %s53 = sphi 0, %s55
      %s56 = sphi 0, %s53
      %s57 = sphi 0, %s56
      %s73 = sphi 0, %s57
      %s77 = sphi 0, %s77
      %s79 = sphi 0, %s77
      %s80 = sphi 0, %s79
      %s94 = sphi 0, %s80
      %s98 = sphi 0, %s98
      %s100 = sphi 0, %s98
      %s101 = sphi 0, %s100
      %s115 = sphi 0, %s101
      %s119 = sphi 0, %s119
      %s121 = sphi 0, %s119
      %s122 = sphi 0, %s121
      %s136 = sphi 0, %s122
      %s140 = sphi 0, %s140
      %s142 = sphi 0, %s140
      %s143 = sphi 0, %s142
      %s157 = sphi 0, %s143
      %s161 = sphi 0, %s161
      %s163 = sphi 0, %s161
      %s164 = sphi 0, %s163
      %s178 = sphi 0, %s164
      %s182 = sphi 0, %s182
      %s184 = sphi 0, %s182
      %s185 = sphi 0, %s184
      %s199 = sphi 0, %s185
      %s203 = sphi 0, %s203
      %s205 = sphi 0, %s203
      %s206 = sphi 0, %s205
      %s220 = sphi 0, %s206
      %s224 = sphi 0, %s224
      %s226 = sphi 0, %s224
      %s227 = sphi 0, %s226
      %s241 = sphi 0, %s227
      %s249 = sphi 0, %s251
      %s252 = sphi 0, %s249
      %s253 = sphi 0, %s252
      %s269 = sphi 0, %s253
      %s277 = sphi 0, %s279
      %s280 = sphi 0, %s277
      %s281 = sphi 0, %s280
      %s297 = sphi 0, %s281
      %s305 = sphi 0, %s307
      %s308 = sphi 0, %s305
      %s309 = sphi 0, %s308
      %s325 = sphi 0, %s309
    $region4: #{tpu_custom_call.1} parent=1 // loop_header_branch
      %32 = sbr.rel (%p30) target = $region8
    $region5: #{tpu_custom_call.1} parent=1 // loop_body
      %s34 = ssub.s32 %s29, 1
      %s35 = ssub.s32 %s29, 2
      %s42 = sadd.s32 1, %s37
      %p43 = scmp.ge.s32.totalorder %s42, 1
      %s44 = scalar_select %p43, 0, %s42
      %s45 = sadd.s32 1, %s36
      %s46 = scalar_select %p43, %s45, %s36
      %p47 = scmp.ge.s32.totalorder %s46, 2
      %s48 = scalar_select %p47, 0, %s46
      %s49 = ssub.s32 %s36, %s48
      %s50 = ssub.s32 %s37, %s44
      %s51 = sor.u32 %s49, %s50
      %p52 = scmp.eq.s32.totalorder %s51, 0
      %s54 = sadd.s32 %s53, 1
      %s55 = scalar_select %p52, %s53, %s54
      %p58 = pneg %p52
      %p59 = scmp.eq.s32.totalorder %s29, 1
      %p60 = por %p58, %p59
      %p61 = scmp.ne.s32.totalorder %s53, %s56
      %p62 = scmp.eq.s32.totalorder %s29, 0
      %p63 = por %p61, %p62
      %p64 = scmp.ne.s32.totalorder %s53, %s56
      %p65 = scmp.eq.s32.totalorder %s34, 1
      %p66 = por %p64, %p65
      %p67 = scmp.ne.s32.totalorder %s56, %s57
      %p68 = scmp.eq.s32.totalorder %s34, 0
      %p69 = por %p67, %p68
      %p70 = scmp.ne.s32.totalorder %s56, %s57
      %p71 = scmp.eq.s32.totalorder %s35, 1
      %p72 = por %p70, %p71
      %p74 = scmp.ne.s32.totalorder %s57, %s73
      %p75 = scmp.eq.s32.totalorder %s35, 0
      %p76 = por %p74, %p75
      %s78 = sadd.s32 %s77, 1
      %p81 = scmp.eq.s32.totalorder %s29, 1
      %p82 = scmp.ne.s32.totalorder %s77, %s79
      %p83 = scmp.eq.s32.totalorder %s29, 0
      %p84 = por %p82, %p83
      %p85 = scmp.ne.s32.totalorder %s77, %s79
      %p86 = scmp.eq.s32.totalorder %s34, 1
      %p87 = por %p85, %p86
      %p88 = scmp.ne.s32.totalorder %s79, %s80
      %p89 = scmp.eq.s32.totalorder %s34, 0
      %p90 = por %p88, %p89
      %p91 = scmp.ne.s32.totalorder %s79, %s80
      %p92 = scmp.eq.s32.totalorder %s35, 1
      %p93 = por %p91, %p92
      %p95 = scmp.ne.s32.totalorder %s80, %s94
      %p96 = scmp.eq.s32.totalorder %s35, 0
      %p97 = por %p95, %p96
      %s99 = sadd.s32 %s98, 1
      %p102 = scmp.eq.s32.totalorder %s29, 1
      %p103 = scmp.ne.s32.totalorder %s98, %s100
      %p104 = scmp.eq.s32.totalorder %s29, 0
      %p105 = por %p103, %p104
      %p106 = scmp.ne.s32.totalorder %s98, %s100
      %p107 = scmp.eq.s32.totalorder %s34, 1
      %p108 = por %p106, %p107
      %p109 = scmp.ne.s32.totalorder %s100, %s101
      %p110 = scmp.eq.s32.totalorder %s34, 0
      %p111 = por %p109, %p110
      %p112 = scmp.ne.s32.totalorder %s100, %s101
      %p113 = scmp.eq.s32.totalorder %s35, 1
      %p114 = por %p112, %p113
      %p116 = scmp.ne.s32.totalorder %s101, %s115
      %p117 = scmp.eq.s32.totalorder %s35, 0
      %p118 = por %p116, %p117
      %s120 = sadd.s32 %s119, 1
      %p123 = scmp.eq.s32.totalorder %s29, 1
      %p124 = scmp.ne.s32.totalorder %s119, %s121
      %p125 = scmp.eq.s32.totalorder %s29, 0
      %p126 = por %p124, %p125
      %p127 = scmp.ne.s32.totalorder %s119, %s121
      %p128 = scmp.eq.s32.totalorder %s34, 1
      %p129 = por %p127, %p128
      %p130 = scmp.ne.s32.totalorder %s121, %s122
      %p131 = scmp.eq.s32.totalorder %s34, 0
      %p132 = por %p130, %p131
      %p133 = scmp.ne.s32.totalorder %s121, %s122
      %p134 = scmp.eq.s32.totalorder %s35, 1
      %p135 = por %p133, %p134
      %p137 = scmp.ne.s32.totalorder %s122, %s136
      %p138 = scmp.eq.s32.totalorder %s35, 0
      %p139 = por %p137, %p138
      %s141 = sadd.s32 %s140, 1
      %p144 = scmp.eq.s32.totalorder %s29, 1
      %p145 = scmp.ne.s32.totalorder %s140, %s142
      %p146 = scmp.eq.s32.totalorder %s29, 0
      %p147 = por %p145, %p146
      %p148 = scmp.ne.s32.totalorder %s140, %s142
      %p149 = scmp.eq.s32.totalorder %s34, 1
      %p150 = por %p148, %p149
      %p151 = scmp.ne.s32.totalorder %s142, %s143
      %p152 = scmp.eq.s32.totalorder %s34, 0
      %p153 = por %p151, %p152
      %p154 = scmp.ne.s32.totalorder %s142, %s143
      %p155 = scmp.eq.s32.totalorder %s35, 1
      %p156 = por %p154, %p155
      %p158 = scmp.ne.s32.totalorder %s143, %s157
      %p159 = scmp.eq.s32.totalorder %s35, 0
      %p160 = por %p158, %p159
      %s162 = sadd.s32 %s161, 1
      %p165 = scmp.eq.s32.totalorder %s29, 1
      %p166 = scmp.ne.s32.totalorder %s161, %s163
      %p167 = scmp.eq.s32.totalorder %s29, 0
      %p168 = por %p166, %p167
      %p169 = scmp.ne.s32.totalorder %s161, %s163
      %p170 = scmp.eq.s32.totalorder %s34, 1
      %p171 = por %p169, %p170
      %p172 = scmp.ne.s32.totalorder %s163, %s164
      %p173 = scmp.eq.s32.totalorder %s34, 0
      %p174 = por %p172, %p173
      %p175 = scmp.ne.s32.totalorder %s163, %s164
      %p176 = scmp.eq.s32.totalorder %s35, 1
      %p177 = por %p175, %p176
      %p179 = scmp.ne.s32.totalorder %s164, %s178
      %p180 = scmp.eq.s32.totalorder %s35, 0
      %p181 = por %p179, %p180
      %s183 = sadd.s32 %s182, 1
      %p186 = scmp.eq.s32.totalorder %s29, 1
      %p187 = scmp.ne.s32.totalorder %s182, %s184
      %p188 = scmp.eq.s32.totalorder %s29, 0
      %p189 = por %p187, %p188
      %p190 = scmp.ne.s32.totalorder %s182, %s184
      %p191 = scmp.eq.s32.totalorder %s34, 1
      %p192 = por %p190, %p191
      %p193 = scmp.ne.s32.totalorder %s184, %s185
      %p194 = scmp.eq.s32.totalorder %s34, 0
      %p195 = por %p193, %p194
      %p196 = scmp.ne.s32.totalorder %s184, %s185
      %p197 = scmp.eq.s32.totalorder %s35, 1
      %p198 = por %p196, %p197
      %p200 = scmp.ne.s32.totalorder %s185, %s199
      %p201 = scmp.eq.s32.totalorder %s35, 0
      %p202 = por %p200, %p201
      %s204 = sadd.s32 %s203, 1
      %p207 = scmp.eq.s32.totalorder %s29, 1
      %p208 = scmp.ne.s32.totalorder %s203, %s205
      %p209 = scmp.eq.s32.totalorder %s29, 0
      %p210 = por %p208, %p209
      %p211 = scmp.ne.s32.totalorder %s203, %s205
      %p212 = scmp.eq.s32.totalorder %s34, 1
      %p213 = por %p211, %p212
      %p214 = scmp.ne.s32.totalorder %s205, %s206
      %p215 = scmp.eq.s32.totalorder %s34, 0
      %p216 = por %p214, %p215
      %p217 = scmp.ne.s32.totalorder %s205, %s206
      %p218 = scmp.eq.s32.totalorder %s35, 1
      %p219 = por %p217, %p218
      %p221 = scmp.ne.s32.totalorder %s206, %s220
      %p222 = scmp.eq.s32.totalorder %s35, 0
      %p223 = por %p221, %p222
      %s225 = sadd.s32 %s224, 1
      %p228 = scmp.eq.s32.totalorder %s29, 1
      %p229 = scmp.ne.s32.totalorder %s224, %s226
      %p230 = scmp.eq.s32.totalorder %s29, 0
      %p231 = por %p229, %p230
      %p232 = scmp.ne.s32.totalorder %s224, %s226
      %p233 = scmp.eq.s32.totalorder %s34, 1
      %p234 = por %p232, %p233
      %p235 = scmp.ne.s32.totalorder %s226, %s227
      %p236 = scmp.eq.s32.totalorder %s34, 0
      %p237 = por %p235, %p236
      %p238 = scmp.ne.s32.totalorder %s226, %s227
      %p239 = scmp.eq.s32.totalorder %s35, 1
      %p240 = por %p238, %p239
      %p242 = scmp.ne.s32.totalorder %s227, %s241
      %p243 = scmp.eq.s32.totalorder %s35, 0
      %p244 = por %p242, %p243
      %s245 = ssub.s32 %s36, %s48
      %s246 = ssub.s32 %s37, %s44
      %s247 = sor.u32 %s245, %s246
      %p248 = scmp.eq.s32.totalorder %s247, 0
      %s250 = sadd.s32 %s249, 1
      %s251 = scalar_select %p248, %s249, %s250
      %p254 = pneg %p248
      %p255 = scmp.eq.s32.totalorder %s29, 1
      %p256 = por %p254, %p255
      %p257 = scmp.ne.s32.totalorder %s249, %s252
      %p258 = scmp.eq.s32.totalorder %s29, 0
      %p259 = por %p257, %p258
      %p260 = scmp.ne.s32.totalorder %s249, %s252
      %p261 = scmp.eq.s32.totalorder %s34, 1
      %p262 = por %p260, %p261
      %p263 = scmp.ne.s32.totalorder %s252, %s253
      %p264 = scmp.eq.s32.totalorder %s34, 0
      %p265 = por %p263, %p264
      %p266 = scmp.ne.s32.totalorder %s252, %s253
      %p267 = scmp.eq.s32.totalorder %s35, 1
      %p268 = por %p266, %p267
      %p270 = scmp.ne.s32.totalorder %s253, %s269
      %p271 = scmp.eq.s32.totalorder %s35, 0
      %p272 = por %p270, %p271
      %s273 = ssub.s32 %s36, %s48
      %s274 = ssub.s32 %s37, %s44
      %s275 = sor.u32 %s273, %s274
      %p276 = scmp.eq.s32.totalorder %s275, 0
      %s278 = sadd.s32 %s277, 1
      %s279 = scalar_select %p276, %s277, %s278
      %p282 = pneg %p276
      %p283 = scmp.eq.s32.totalorder %s29, 1
      %p284 = por %p282, %p283
      %p285 = scmp.ne.s32.totalorder %s277, %s280
      %p286 = scmp.eq.s32.totalorder %s29, 0
      %p287 = por %p285, %p286
      %p288 = scmp.ne.s32.totalorder %s277, %s280
      %p289 = scmp.eq.s32.totalorder %s34, 1
      %p290 = por %p288, %p289
      %p291 = scmp.ne.s32.totalorder %s280, %s281
      %p292 = scmp.eq.s32.totalorder %s34, 0
      %p293 = por %p291, %p292
      %p294 = scmp.ne.s32.totalorder %s280, %s281
      %p295 = scmp.eq.s32.totalorder %s35, 1
      %p296 = por %p294, %p295
      %p298 = scmp.ne.s32.totalorder %s281, %s297
      %p299 = scmp.eq.s32.totalorder %s35, 0
      %p300 = por %p298, %p299
      %s301 = ssub.s32 %s36, %s48
      %s302 = ssub.s32 %s37, %s44
      %s303 = sor.u32 %s301, %s302
      %p304 = scmp.eq.s32.totalorder %s303, 0
      %s306 = sadd.s32 %s305, 1
      %s307 = scalar_select %p304, %s305, %s306
      %p310 = pneg %p304
      %p311 = scmp.eq.s32.totalorder %s29, 1
      %p312 = por %p310, %p311
      %p313 = scmp.ne.s32.totalorder %s305, %s308
      %p314 = scmp.eq.s32.totalorder %s29, 0
      %p315 = por %p313, %p314
      %p316 = scmp.ne.s32.totalorder %s305, %s308
      %p317 = scmp.eq.s32.totalorder %s34, 1
      %p318 = por %p316, %p317
      %p319 = scmp.ne.s32.totalorder %s308, %s309
      %p320 = scmp.eq.s32.totalorder %s34, 0
      %p321 = por %p319, %p320
      %p322 = scmp.ne.s32.totalorder %s308, %s309
      %p323 = scmp.eq.s32.totalorder %s35, 1
      %p324 = por %p322, %p323
      %p326 = scmp.ne.s32.totalorder %s309, %s325
      %p327 = scmp.eq.s32.totalorder %s35, 0
      %p328 = por %p326, %p327
      %p329 = scmp.le.s32.totalorder 1, %s29
      %p330 = scmp.lt.s32.totalorder %s29, 3
      %p331 = pnand %p329, %p330
      %p332 = pneg %p331
      // Predicated region
      $region9: #{tpu_custom_call.1} parent=5 // pred_check
        _
      $region10: #{tpu_custom_call.1} parent=5 // pred_check_branch
        %334 = sbr.rel (%p331) target = $region12
      $region11: #{tpu_custom_call.1} parent=5 // pred_region
        %s335 = ssub.s32 %s29, 1
        // Predicated region
        $region13: #{tpu_custom_call.1} parent=11 // pred_check
          %p336 = pneg %p90
        $region14: #{tpu_custom_call.1} parent=11 // pred_check_branch
          %338 = sbr.rel (%p336) target = $region16
        $region15: #{tpu_custom_call.1} parent=11 // pred_region
          _
        $region16: #{tpu_custom_call.1} parent=11 // pred_fallthru
          _
        // Predicated region
        $region17: #{tpu_custom_call.1} parent=11 // pred_check
          %p339 = pneg %p111
        $region18: #{tpu_custom_call.1} parent=11 // pred_check_branch
          %341 = sbr.rel (%p339) target = $region20
        $region19: #{tpu_custom_call.1} parent=11 // pred_region
          _
        $region20: #{tpu_custom_call.1} parent=11 // pred_fallthru
          _
        // Predicated region
        $region21: #{tpu_custom_call.1} parent=11 // pred_check
          %p342 = pneg %p132
        $region22: #{tpu_custom_call.1} parent=11 // pred_check_branch
          %344 = sbr.rel (%p342) target = $region24
        $region23: #{tpu_custom_call.1} parent=11 // pred_region
          %s346 = ssub.s32 2048, 2048
          %347 = vsyncadd [#allocation6], %s346
          %s348 = sshll.u32 [#allocation5], 4
          %s349 = int_to_ptr.vmem [resolvable:$true] %s348
          %354 = dma.hbm_to_vmem [thread:$0]  %s3, 2048, %s349, [#allocation6], 128, 128, 8
        $region24: #{tpu_custom_call.1} parent=11 // pred_fallthru
          _
        // Predicated region
        $region25: #{tpu_custom_call.1} parent=11 // pred_check
          %p355 = pneg %p153
        $region26: #{tpu_custom_call.1} parent=11 // pred_check_branch
          %357 = sbr.rel (%p355) target = $region28
        $region27: #{tpu_custom_call.1} parent=11 // pred_region
          %s359 = ssub.s32 2048, 2048
          %360 = vsyncadd [#allocation6], %s359
          %s361 = sshll.u32 [#allocation7], 4
          %s362 = int_to_ptr.vmem [resolvable:$true] %s361
          %367 = dma.hbm_to_vmem [thread:$0]  %s4, 2048, %s362, [#allocation6], 128, 128, 8
        $region28: #{tpu_custom_call.1} parent=11 // pred_fallthru
          _
        // Predicated region
        $region29: #{tpu_custom_call.1} parent=11 // pred_check
          %p368 = pneg %p174
        $region30: #{tpu_custom_call.1} parent=11 // pred_check_branch
          %370 = sbr.rel (%p368) target = $region32
        $region31: #{tpu_custom_call.1} parent=11 // pred_region
          %s372 = ssub.s32 2048, 2048
          %373 = vsyncadd [#allocation9], %s372
          %s374 = sshll.u32 [#allocation8], 4
          %s375 = int_to_ptr.vmem [resolvable:$true] %s374
          %380 = dma.hbm_to_vmem [thread:$0]  %s5, 2048, %s375, [#allocation9], 128, 128, 8
        $region32: #{tpu_custom_call.1} parent=11 // pred_fallthru
          _
        // Predicated region
        $region33: #{tpu_custom_call.1} parent=11 // pred_check
          %p381 = pneg %p195
        $region34: #{tpu_custom_call.1} parent=11 // pred_check_branch
          %383 = sbr.rel (%p381) target = $region36
        $region35: #{tpu_custom_call.1} parent=11 // pred_region
          _
        $region36: #{tpu_custom_call.1} parent=11 // pred_fallthru
          _
        // Predicated region
        $region37: #{tpu_custom_call.1} parent=11 // pred_check
          %p384 = pneg %p216
        $region38: #{tpu_custom_call.1} parent=11 // pred_check_branch
          %386 = sbr.rel (%p384) target = $region40
        $region39: #{tpu_custom_call.1} parent=11 // pred_region
          _
        $region40: #{tpu_custom_call.1} parent=11 // pred_fallthru
          _
        // Predicated region
        $region41: #{tpu_custom_call.1} parent=11 // pred_check
          %p387 = pneg %p237
        $region42: #{tpu_custom_call.1} parent=11 // pred_check_branch
          %389 = sbr.rel (%p387) target = $region44
        $region43: #{tpu_custom_call.1} parent=11 // pred_region
          _
        $region44: #{tpu_custom_call.1} parent=11 // pred_fallthru
          _
      $region12: #{tpu_custom_call.1} parent=5 // pred_fallthru
        _
      %p390 = scmp.lt.s32.totalorder %s29, 2
      // Predicated region
      $region45: #{tpu_custom_call.1} parent=5 // pred_check
        %p391 = pneg %p390
      $region46: #{tpu_custom_call.1} parent=5 // pred_check_branch
        %393 = sbr.rel (%p391) target = $region48
      $region47: #{tpu_custom_call.1} parent=5 // pred_region
        // Predicated region
        $region49: #{tpu_custom_call.1} parent=47 // pred_check
          %p394 = pneg %p63
        $region50: #{tpu_custom_call.1} parent=47 // pred_check_branch
          %396 = sbr.rel (%p394) target = $region52
        $region51: #{tpu_custom_call.1} parent=47 // pred_region
          %s397 = sand.u32 %s53, 1
          %s398 = scalar_lea.sflag [#allocation3], %s397
          %s399 = sand.u32 %s53, 1
          %s400 = smul.addr %s399, 256
          %s401 = scalar_lea.vmem [#allocation2], %s400
          %s402 = smul.u32 32, %s37
          %s404 = ssub.s32 4096, 4096
          %405 = vsyncadd %s398, %s404
          %s406 = smul.addr %s36, 32
          %s407 = sadd.s32 %s402, %s406
          %s408 = smul.addr %s407, 128
          %s409 = scalar_lea.hbm %s0, %s408
          %s410 = sshll.u32 %s401, 4
          %s411 = int_to_ptr.vmem [resolvable:$true] %s410
          %416 = dma.hbm_to_vmem [thread:$0]  %s409, 4096, %s411, %s398, 128, 128, 8
        $region52: #{tpu_custom_call.1} parent=47 // pred_fallthru
          _
      $region48: #{tpu_custom_call.1} parent=5 // pred_fallthru
        _
      %p417 = scmp.le.s32.totalorder 1, %s29
      %p418 = scmp.lt.s32.totalorder %s29, 3
      %p419 = pnand %p417, %p418
      %p420 = pneg %p419
      // Predicated region
      $region53: #{tpu_custom_call.1} parent=5 // pred_check
        _
      $region54: #{tpu_custom_call.1} parent=5 // pred_check_branch
        %422 = sbr.rel (%p419) target = $region56
      $region55: #{tpu_custom_call.1} parent=5 // pred_region
        %s423 = ssub.s32 %s29, 1
        %s424 = sand.u32 %s56, 1
        %s425 = scalar_lea.sflag [#allocation3], %s424
        %s426 = sand.u32 %s56, 1
        %s427 = smul.addr %s426, 256
        %s428 = scalar_lea.vmem [#allocation2], %s427
        // Predicated region
        $region57: #{tpu_custom_call.1} parent=55 // pred_check
          %p429 = pneg %p69
        $region58: #{tpu_custom_call.1} parent=55 // pred_check_branch
          %431 = sbr.rel (%p429) target = $region60
        $region59: #{tpu_custom_call.1} parent=55 // pred_region
          %432 = dma.done %s425, 4096
        $region60: #{tpu_custom_call.1} parent=55 // pred_fallthru
          _
        // Predicated region
        $region61: #{tpu_custom_call.1} parent=55 // pred_check
          %p433 = pneg %p132
        $region62: #{tpu_custom_call.1} parent=55 // pred_check_branch
          %435 = sbr.rel (%p433) target = $region64
        $region63: #{tpu_custom_call.1} parent=55 // pred_region
          %436 = dma.done [#allocation6], 2048
        $region64: #{tpu_custom_call.1} parent=55 // pred_fallthru
          _
        // Predicated region
        $region65: #{tpu_custom_call.1} parent=55 // pred_check
          %p437 = pneg %p153
        $region66: #{tpu_custom_call.1} parent=55 // pred_check_branch
          %439 = sbr.rel (%p437) target = $region68
        $region67: #{tpu_custom_call.1} parent=55 // pred_region
          %440 = dma.done [#allocation6], 2048
        $region68: #{tpu_custom_call.1} parent=55 // pred_fallthru
          _
        // Predicated region
        $region69: #{tpu_custom_call.1} parent=55 // pred_check
          %p441 = pneg %p174
        $region70: #{tpu_custom_call.1} parent=55 // pred_check_branch
          %443 = sbr.rel (%p441) target = $region72
        $region71: #{tpu_custom_call.1} parent=55 // pred_region
          %444 = dma.done [#allocation9], 2048
        $region72: #{tpu_custom_call.1} parent=55 // pred_fallthru
          _
        %s445 = sand.u32 %s56, 1
        %s446 = scalar_lea.sflag [#allocation3], %s445
        %s447 = sand.u32 %s56, 1
        %s448 = smul.addr %s447, 256
        %s449 = scalar_lea.vmem [#allocation2], %s448
        %p450 = pneg %p69
        %p451 = pneg %p66
        %p452 = pneg %p90
        %p453 = pneg %p87
        %p454 = pneg %p111
        %p455 = pneg %p108
        %p456 = pneg %p132
        %p457 = pneg %p129
        %p458 = pneg %p153
        %p459 = pneg %p150
        %p460 = pneg %p174
        %p461 = pneg %p171
        %p462 = pneg %p195
        %p463 = pneg %p192
        %p464 = pneg %p216
        %p465 = pneg %p213
        %p466 = pneg %p237
        %p467 = pneg %p234
        %p468 = pneg %p265
        %p469 = pneg %p262
        %s470 = sand.u32 %s252, 1
        %s471 = scalar_lea.sflag [#allocation4], %s470
        %s472 = sand.u32 %s252, 1
        %s473 = smul.addr %s472, 256
        %s474 = scalar_lea.vmem [#allocation10], %s473
        %p475 = pneg %p293
        %p476 = pneg %p290
        %s477 = sand.u32 %s34, 1
        %s478 = scalar_lea.sflag [#allocation12], %s477
        %s479 = sand.u32 %s280, 1
        %s480 = smul.addr %s479, 256
        %s481 = scalar_lea.vmem [#allocation11], %s480
        %p482 = pneg %p321
        %p483 = pneg %p318
        %s484 = sand.u32 %s34, 1
        %s485 = scalar_lea.sflag [#allocation12], %s484
        %s486 = sand.u32 %s308, 1
        %s487 = smul.addr %s486, 256
        %s488 = scalar_lea.vmem [#allocation13], %s487
        %s489 = smul.u32 32, %s39
        %s490 = smul.u32 32, %s39
        %s491 = smul.u32 32, %s39
        %s492 = smul.u32 32, %s39
        %v493 = vld [vmem:[%s428] sm:$0xff]
        %v494 = vld [vmem:[%s428 + $0x8] sm:$0xff]
        %v495 = vld [vmem:[%s428 + $0x10] sm:$0xff]
        %v496 = vld [vmem:[%s428 + $0x18] sm:$0xff]
        %v497 = vld [vmem:[%s428 + $0x20] sm:$0xff]
        %v498 = vld [vmem:[%s428 + $0x28] sm:$0xff]
        %v499 = vld [vmem:[%s428 + $0x30] sm:$0xff]
        %v500 = vld [vmem:[%s428 + $0x38] sm:$0xff]
        %v501 = vld [vmem:[%s428 + $0x40] sm:$0xff]
        %v502 = vld [vmem:[%s428 + $0x48] sm:$0xff]
        %v503 = vld [vmem:[%s428 + $0x50] sm:$0xff]
        %v504 = vld [vmem:[%s428 + $0x58] sm:$0xff]
        %v505 = vld [vmem:[%s428 + $0x60] sm:$0xff]
        %v506 = vld [vmem:[%s428 + $0x68] sm:$0xff]
        %v507 = vld [vmem:[%s428 + $0x70] sm:$0xff]
        %v508 = vld [vmem:[%s428 + $0x78] sm:$0xff]
        %v509 = vld [vmem:[%s428 + $0x80] sm:$0xff]
        %v510 = vld [vmem:[%s428 + $0x88] sm:$0xff]
        %v511 = vld [vmem:[%s428 + $0x90] sm:$0xff]
        %v512 = vld [vmem:[%s428 + $0x98] sm:$0xff]
        %v513 = vld [vmem:[%s428 + $0xa0] sm:$0xff]
        %v514 = vld [vmem:[%s428 + $0xa8] sm:$0xff]
        %v515 = vld [vmem:[%s428 + $0xb0] sm:$0xff]
        %v516 = vld [vmem:[%s428 + $0xb8] sm:$0xff]
        %v517 = vld [vmem:[%s428 + $0xc0] sm:$0xff]
        %v518 = vld [vmem:[%s428 + $0xc8] sm:$0xff]
        %v519 = vld [vmem:[%s428 + $0xd0] sm:$0xff]
        %v520 = vld [vmem:[%s428 + $0xd8] sm:$0xff]
        %v521 = vld [vmem:[%s428 + $0xe0] sm:$0xff]
        %v522 = vld [vmem:[%s428 + $0xe8] sm:$0xff]
        %v523 = vld [vmem:[%s428 + $0xf0] sm:$0xff]
        %v524 = vld [vmem:[%s428 + $0xf8] sm:$0xff]
        %v525 = vld [vmem:[%s1] sm:$0x1]
        %v526 = vld [vmem:[%s2] sm:$0x1]
        %527 = vadd.xlane.f32.xlu0 %v493
        %v528 = vpop.xlane.xlu0 %527
        %529 = vadd.xlane.f32.xlu0 %v494
        %v530 = vpop.xlane.xlu0 %529
        %531 = vadd.xlane.f32.xlu0 %v495
        %v532 = vpop.xlane.xlu0 %531
        %533 = vadd.xlane.f32.xlu0 %v496
        %v534 = vpop.xlane.xlu0 %533
        %535 = vadd.xlane.f32.xlu0 %v497
        %v536 = vpop.xlane.xlu0 %535
        %537 = vadd.xlane.f32.xlu0 %v498
        %v538 = vpop.xlane.xlu0 %537
        %539 = vadd.xlane.f32.xlu0 %v499
        %v540 = vpop.xlane.xlu0 %539
        %541 = vadd.xlane.f32.xlu0 %v500
        %v542 = vpop.xlane.xlu0 %541
        %543 = vadd.xlane.f32.xlu0 %v501
        %v544 = vpop.xlane.xlu0 %543
        %545 = vadd.xlane.f32.xlu0 %v502
        %v546 = vpop.xlane.xlu0 %545
        %547 = vadd.xlane.f32.xlu0 %v503
        %v548 = vpop.xlane.xlu0 %547
        %549 = vadd.xlane.f32.xlu0 %v504
        %v550 = vpop.xlane.xlu0 %549
        %551 = vadd.xlane.f32.xlu0 %v505
        %v552 = vpop.xlane.xlu0 %551
        %553 = vadd.xlane.f32.xlu0 %v506
        %v554 = vpop.xlane.xlu0 %553
        %555 = vadd.xlane.f32.xlu0 %v507
        %v556 = vpop.xlane.xlu0 %555
        %557 = vadd.xlane.f32.xlu0 %v508
        %v558 = vpop.xlane.xlu0 %557
        %559 = vadd.xlane.f32.xlu0 %v509
        %v560 = vpop.xlane.xlu0 %559
        %561 = vadd.xlane.f32.xlu0 %v510
        %v562 = vpop.xlane.xlu0 %561
        %563 = vadd.xlane.f32.xlu0 %v511
        %v564 = vpop.xlane.xlu0 %563
        %565 = vadd.xlane.f32.xlu0 %v512
        %v566 = vpop.xlane.xlu0 %565
        %567 = vadd.xlane.f32.xlu0 %v513
        %v568 = vpop.xlane.xlu0 %567
        %569 = vadd.xlane.f32.xlu0 %v514
        %v570 = vpop.xlane.xlu0 %569
        %571 = vadd.xlane.f32.xlu0 %v515
        %v572 = vpop.xlane.xlu0 %571
        %573 = vadd.xlane.f32.xlu0 %v516
        %v574 = vpop.xlane.xlu0 %573
        %575 = vadd.xlane.f32.xlu0 %v517
        %v576 = vpop.xlane.xlu0 %575
        %577 = vadd.xlane.f32.xlu0 %v518
        %v578 = vpop.xlane.xlu0 %577
        %579 = vadd.xlane.f32.xlu0 %v519
        %v580 = vpop.xlane.xlu0 %579
        %581 = vadd.xlane.f32.xlu0 %v520
        %v582 = vpop.xlane.xlu0 %581
        %583 = vadd.xlane.f32.xlu0 %v521
        %v584 = vpop.xlane.xlu0 %583
        %585 = vadd.xlane.f32.xlu0 %v522
        %v586 = vpop.xlane.xlu0 %585
        %587 = vadd.xlane.f32.xlu0 %v523
        %v588 = vpop.xlane.xlu0 %587
        %589 = vadd.xlane.f32.xlu0 %v524
        %v590 = vpop.xlane.xlu0 %589
        %v591 = vrcp.pop 128.0
        %v592 = vmul.f32 %v528, %v591
        %v593 = vmul.f32 %v530, %v591
        %v594 = vmul.f32 %v532, %v591
        %v595 = vmul.f32 %v534, %v591
        %v596 = vmul.f32 %v536, %v591
        %v597 = vmul.f32 %v538, %v591
        %v598 = vmul.f32 %v540, %v591
        %v599 = vmul.f32 %v542, %v591
        %v600 = vmul.f32 %v544, %v591
        %v601 = vmul.f32 %v546, %v591
        %v602 = vmul.f32 %v548, %v591
        %v603 = vmul.f32 %v550, %v591
        %v604 = vmul.f32 %v552, %v591
        %v605 = vmul.f32 %v554, %v591
        %v606 = vmul.f32 %v556, %v591
        %v607 = vmul.f32 %v558, %v591
        %v608 = vmul.f32 %v560, %v591
        %v609 = vmul.f32 %v562, %v591
        %v610 = vmul.f32 %v564, %v591
        %v611 = vmul.f32 %v566, %v591
        %v612 = vmul.f32 %v568, %v591
        %v613 = vmul.f32 %v570, %v591
        %v614 = vmul.f32 %v572, %v591
        %v615 = vmul.f32 %v574, %v591
        %v616 = vmul.f32 %v576, %v591
        %v617 = vmul.f32 %v578, %v591
        %v618 = vmul.f32 %v580, %v591
        %v619 = vmul.f32 %v582, %v591
        %v620 = vmul.f32 %v584, %v591
        %v621 = vmul.f32 %v586, %v591
        %v622 = vmul.f32 %v588, %v591
        %v623 = vmul.f32 %v590, %v591
        %v624 = vsub.f32 %v493, %v592
        %v625 = vsub.f32 %v494, %v593
        %v626 = vsub.f32 %v495, %v594
        %v627 = vsub.f32 %v496, %v595
        %v628 = vsub.f32 %v497, %v596
        %v629 = vsub.f32 %v498, %v597
        %v630 = vsub.f32 %v499, %v598
        %v631 = vsub.f32 %v500, %v599
        %v632 = vsub.f32 %v501, %v600
        %v633 = vsub.f32 %v502, %v601
        %v634 = vsub.f32 %v503, %v602
        %v635 = vsub.f32 %v504, %v603
        %v636 = vsub.f32 %v505, %v604
        %v637 = vsub.f32 %v506, %v605
        %v638 = vsub.f32 %v507, %v606
        %v639 = vsub.f32 %v508, %v607
        %v640 = vsub.f32 %v509, %v608
        %v641 = vsub.f32 %v510, %v609
        %v642 = vsub.f32 %v511, %v610
        %v643 = vsub.f32 %v512, %v611
        %v644 = vsub.f32 %v513, %v612
        %v645 = vsub.f32 %v514, %v613
        %v646 = vsub.f32 %v515, %v614
        %v647 = vsub.f32 %v516, %v615
        %v648 = vsub.f32 %v517, %v616
        %v649 = vsub.f32 %v518, %v617
        %v650 = vsub.f32 %v519, %v618
        %v651 = vsub.f32 %v520, %v619
        %v652 = vsub.f32 %v521, %v620
        %v653 = vsub.f32 %v522, %v621
        %v654 = vsub.f32 %v523, %v622
        %v655 = vsub.f32 %v524, %v623
        %v656 = vmul.f32 %v624, %v624
        %v657 = vmul.f32 %v625, %v625
        %v658 = vmul.f32 %v626, %v626
        %v659 = vmul.f32 %v627, %v627
        %v660 = vmul.f32 %v628, %v628
        %v661 = vmul.f32 %v629, %v629
        %v662 = vmul.f32 %v630, %v630
        %v663 = vmul.f32 %v631, %v631
        %v664 = vmul.f32 %v632, %v632
        %v665 = vmul.f32 %v633, %v633
        %v666 = vmul.f32 %v634, %v634
        %v667 = vmul.f32 %v635, %v635
        %v668 = vmul.f32 %v636, %v636
        %v669 = vmul.f32 %v637, %v637
        %v670 = vmul.f32 %v638, %v638
        %v671 = vmul.f32 %v639, %v639
        %v672 = vmul.f32 %v640, %v640
        %v673 = vmul.f32 %v641, %v641
        %v674 = vmul.f32 %v642, %v642
        %v675 = vmul.f32 %v643, %v643
        %v676 = vmul.f32 %v644, %v644
        %v677 = vmul.f32 %v645, %v645
        %v678 = vmul.f32 %v646, %v646
        %v679 = vmul.f32 %v647, %v647
        %v680 = vmul.f32 %v648, %v648
        %v681 = vmul.f32 %v649, %v649
        %v682 = vmul.f32 %v650, %v650
        %v683 = vmul.f32 %v651, %v651
        %v684 = vmul.f32 %v652, %v652
        %v685 = vmul.f32 %v653, %v653
        %v686 = vmul.f32 %v654, %v654
        %v687 = vmul.f32 %v655, %v655
        %688 = vadd.xlane.f32.xlu0 %v656
        %v689 = vpop.xlane.xlu0 %688
        %690 = vadd.xlane.f32.xlu0 %v657
        %v691 = vpop.xlane.xlu0 %690
        %692 = vadd.xlane.f32.xlu0 %v658
        %v693 = vpop.xlane.xlu0 %692
        %694 = vadd.xlane.f32.xlu0 %v659
        %v695 = vpop.xlane.xlu0 %694
        %696 = vadd.xlane.f32.xlu0 %v660
        %v697 = vpop.xlane.xlu0 %696
        %698 = vadd.xlane.f32.xlu0 %v661
        %v699 = vpop.xlane.xlu0 %698
        %700 = vadd.xlane.f32.xlu0 %v662
        %v701 = vpop.xlane.xlu0 %700
        %702 = vadd.xlane.f32.xlu0 %v663
        %v703 = vpop.xlane.xlu0 %702
        %704 = vadd.xlane.f32.xlu0 %v664
        %v705 = vpop.xlane.xlu0 %704
        %706 = vadd.xlane.f32.xlu0 %v665
        %v707 = vpop.xlane.xlu0 %706
        %708 = vadd.xlane.f32.xlu0 %v666
        %v709 = vpop.xlane.xlu0 %708
        %710 = vadd.xlane.f32.xlu0 %v667
        %v711 = vpop.xlane.xlu0 %710
        %712 = vadd.xlane.f32.xlu0 %v668
        %v713 = vpop.xlane.xlu0 %712
        %714 = vadd.xlane.f32.xlu0 %v669
        %v715 = vpop.xlane.xlu0 %714
        %716 = vadd.xlane.f32.xlu0 %v670
        %v717 = vpop.xlane.xlu0 %716
        %718 = vadd.xlane.f32.xlu0 %v671
        %v719 = vpop.xlane.xlu0 %718
        %720 = vadd.xlane.f32.xlu0 %v672
        %v721 = vpop.xlane.xlu0 %720
        %722 = vadd.xlane.f32.xlu0 %v673
        %v723 = vpop.xlane.xlu0 %722
        %724 = vadd.xlane.f32.xlu0 %v674
        %v725 = vpop.xlane.xlu0 %724
        %726 = vadd.xlane.f32.xlu0 %v675
        %v727 = vpop.xlane.xlu0 %726
        %728 = vadd.xlane.f32.xlu0 %v676
        %v729 = vpop.xlane.xlu0 %728
        %730 = vadd.xlane.f32.xlu0 %v677
        %v731 = vpop.xlane.xlu0 %730
        %732 = vadd.xlane.f32.xlu0 %v678
        %v733 = vpop.xlane.xlu0 %732
        %734 = vadd.xlane.f32.xlu0 %v679
        %v735 = vpop.xlane.xlu0 %734
        %736 = vadd.xlane.f32.xlu0 %v680
        %v737 = vpop.xlane.xlu0 %736
        %738 = vadd.xlane.f32.xlu0 %v681
        %v739 = vpop.xlane.xlu0 %738
        %740 = vadd.xlane.f32.xlu0 %v682
        %v741 = vpop.xlane.xlu0 %740
        %742 = vadd.xlane.f32.xlu0 %v683
        %v743 = vpop.xlane.xlu0 %742
        %744 = vadd.xlane.f32.xlu0 %v684
        %v745 = vpop.xlane.xlu0 %744
        %746 = vadd.xlane.f32.xlu0 %v685
        %v747 = vpop.xlane.xlu0 %746
        %748 = vadd.xlane.f32.xlu0 %v686
        %v749 = vpop.xlane.xlu0 %748
        %750 = vadd.xlane.f32.xlu0 %v687
        %v751 = vpop.xlane.xlu0 %750
        %v752 = vmul.f32 %v689, %v591
        %v753 = vmul.f32 %v691, %v591
        %v754 = vmul.f32 %v693, %v591
        %v755 = vmul.f32 %v695, %v591
        %v756 = vmul.f32 %v697, %v591
        %v757 = vmul.f32 %v699, %v591
        %v758 = vmul.f32 %v701, %v591
        %v759 = vmul.f32 %v703, %v591
        %v760 = vmul.f32 %v705, %v591
        %v761 = vmul.f32 %v707, %v591
        %v762 = vmul.f32 %v709, %v591
        %v763 = vmul.f32 %v711, %v591
        %v764 = vmul.f32 %v713, %v591
        %v765 = vmul.f32 %v715, %v591
        %v766 = vmul.f32 %v717, %v591
        %v767 = vmul.f32 %v719, %v591
        %v768 = vmul.f32 %v721, %v591
        %v769 = vmul.f32 %v723, %v591
        %v770 = vmul.f32 %v725, %v591
        %v771 = vmul.f32 %v727, %v591
        %v772 = vmul.f32 %v729, %v591
        %v773 = vmul.f32 %v731, %v591
        %v774 = vmul.f32 %v733, %v591
        %v775 = vmul.f32 %v735, %v591
        %v776 = vmul.f32 %v737, %v591
        %v777 = vmul.f32 %v739, %v591
        %v778 = vmul.f32 %v741, %v591
        %v779 = vmul.f32 %v743, %v591
        %v780 = vmul.f32 %v745, %v591
        %v781 = vmul.f32 %v747, %v591
        %v782 = vmul.f32 %v749, %v591
        %v783 = vmul.f32 %v751, %v591
        %v784 = vadd.f32 %v752, 1e-05
        %v785 = vadd.f32 %v753, 1e-05
        %v786 = vadd.f32 %v754, 1e-05
        %v787 = vadd.f32 %v755, 1e-05
        %v788 = vadd.f32 %v756, 1e-05
        %v789 = vadd.f32 %v757, 1e-05
        %v790 = vadd.f32 %v758, 1e-05
        %v791 = vadd.f32 %v759, 1e-05
        %v792 = vadd.f32 %v760, 1e-05
        %v793 = vadd.f32 %v761, 1e-05
        %v794 = vadd.f32 %v762, 1e-05
        %v795 = vadd.f32 %v763, 1e-05
        %v796 = vadd.f32 %v764, 1e-05
        %v797 = vadd.f32 %v765, 1e-05
        %v798 = vadd.f32 %v766, 1e-05
        %v799 = vadd.f32 %v767, 1e-05
        %v800 = vadd.f32 %v768, 1e-05
        %v801 = vadd.f32 %v769, 1e-05
        %v802 = vadd.f32 %v770, 1e-05
        %v803 = vadd.f32 %v771, 1e-05
        %v804 = vadd.f32 %v772, 1e-05
        %v805 = vadd.f32 %v773, 1e-05
        %v806 = vadd.f32 %v774, 1e-05
        %v807 = vadd.f32 %v775, 1e-05
        %v808 = vadd.f32 %v776, 1e-05
        %v809 = vadd.f32 %v777, 1e-05
        %v810 = vadd.f32 %v778, 1e-05
        %v811 = vadd.f32 %v779, 1e-05
        %v812 = vadd.f32 %v780, 1e-05
        %v813 = vadd.f32 %v781, 1e-05
        %v814 = vadd.f32 %v782, 1e-05
        %v815 = vadd.f32 %v783, 1e-05
        %v816 = vrsqrt.pop %v784
        %v817 = vrsqrt.pop %v785
        %v818 = vrsqrt.pop %v786
        %v819 = vrsqrt.pop %v787
        %v820 = vrsqrt.pop %v788
        %v821 = vrsqrt.pop %v789
        %v822 = vrsqrt.pop %v790
        %v823 = vrsqrt.pop %v791
        %v824 = vrsqrt.pop %v792
        %v825 = vrsqrt.pop %v793
        %v826 = vrsqrt.pop %v794
        %v827 = vrsqrt.pop %v795
        %v828 = vrsqrt.pop %v796
        %v829 = vrsqrt.pop %v797
        %v830 = vrsqrt.pop %v798
        %v831 = vrsqrt.pop %v799
        %v832 = vrsqrt.pop %v800
        %v833 = vrsqrt.pop %v801
        %v834 = vrsqrt.pop %v802
        %v835 = vrsqrt.pop %v803
        %v836 = vrsqrt.pop %v804
        %v837 = vrsqrt.pop %v805
        %v838 = vrsqrt.pop %v806
        %v839 = vrsqrt.pop %v807
        %v840 = vrsqrt.pop %v808
        %v841 = vrsqrt.pop %v809
        %v842 = vrsqrt.pop %v810
        %v843 = vrsqrt.pop %v811
        %v844 = vrsqrt.pop %v812
        %v845 = vrsqrt.pop %v813
        %v846 = vrsqrt.pop %v814
        %v847 = vrsqrt.pop %v815
        %v848 = vmul.f32 %v624, %v816
        %v849 = vmul.f32 %v625, %v817
        %v850 = vmul.f32 %v626, %v818
        %v851 = vmul.f32 %v627, %v819
        %v852 = vmul.f32 %v628, %v820
        %v853 = vmul.f32 %v629, %v821
        %v854 = vmul.f32 %v630, %v822
        %v855 = vmul.f32 %v631, %v823
        %v856 = vmul.f32 %v632, %v824
        %v857 = vmul.f32 %v633, %v825
        %v858 = vmul.f32 %v634, %v826
        %v859 = vmul.f32 %v635, %v827
        %v860 = vmul.f32 %v636, %v828
        %v861 = vmul.f32 %v637, %v829
        %v862 = vmul.f32 %v638, %v830
        %v863 = vmul.f32 %v639, %v831
        %v864 = vmul.f32 %v640, %v832
        %v865 = vmul.f32 %v641, %v833
        %v866 = vmul.f32 %v642, %v834
        %v867 = vmul.f32 %v643, %v835
        %v868 = vmul.f32 %v644, %v836
        %v869 = vmul.f32 %v645, %v837
        %v870 = vmul.f32 %v646, %v838
        %v871 = vmul.f32 %v647, %v839
        %v872 = vmul.f32 %v648, %v840
        %v873 = vmul.f32 %v649, %v841
        %v874 = vmul.f32 %v650, %v842
        %v875 = vmul.f32 %v651, %v843
        %v876 = vmul.f32 %v652, %v844
        %v877 = vmul.f32 %v653, %v845
        %v878 = vmul.f32 %v654, %v846
        %v879 = vmul.f32 %v655, %v847
        %v881 = vlaneseq
        %v882 = vshrl.u32 %v881, 7
        %v883 = vsub.s32 0, %v882
        %v884 = vrot.slane %v525, %v883
        %v886 = vmul.f32 %v848, %v884
        %v887 = vmul.f32 %v849, %v884
        %v888 = vmul.f32 %v850, %v884
        %v889 = vmul.f32 %v851, %v884
        %v890 = vmul.f32 %v852, %v884
        %v891 = vmul.f32 %v853, %v884
        %v892 = vmul.f32 %v854, %v884
        %v893 = vmul.f32 %v855, %v884
        %v894 = vmul.f32 %v856, %v884
        %v895 = vmul.f32 %v857, %v884
        %v896 = vmul.f32 %v858, %v884
        %v897 = vmul.f32 %v859, %v884
        %v898 = vmul.f32 %v860, %v884
        %v899 = vmul.f32 %v861, %v884
        %v900 = vmul.f32 %v862, %v884
        %v901 = vmul.f32 %v863, %v884
        %v902 = vmul.f32 %v864, %v884
        %v903 = vmul.f32 %v865, %v884
        %v904 = vmul.f32 %v866, %v884
        %v905 = vmul.f32 %v867, %v884
        %v906 = vmul.f32 %v868, %v884
        %v907 = vmul.f32 %v869, %v884
        %v908 = vmul.f32 %v870, %v884
        %v909 = vmul.f32 %v871, %v884
        %v910 = vmul.f32 %v872, %v884
        %v911 = vmul.f32 %v873, %v884
        %v912 = vmul.f32 %v874, %v884
        %v913 = vmul.f32 %v875, %v884
        %v914 = vmul.f32 %v876, %v884
        %v915 = vmul.f32 %v877, %v884
        %v916 = vmul.f32 %v878, %v884
        %v917 = vmul.f32 %v879, %v884
        %v919 = vlaneseq
        %v920 = vshrl.u32 %v919, 7
        %v921 = vsub.s32 0, %v920
        %v922 = vrot.slane %v526, %v921
        %v924 = vadd.f32 %v886, %v922
        %v925 = vadd.f32 %v887, %v922
        %v926 = vadd.f32 %v888, %v922
        %v927 = vadd.f32 %v889, %v922
        %v928 = vadd.f32 %v890, %v922
        %v929 = vadd.f32 %v891, %v922
        %v930 = vadd.f32 %v892, %v922
        %v931 = vadd.f32 %v893, %v922
        %v932 = vadd.f32 %v894, %v922
        %v933 = vadd.f32 %v895, %v922
        %v934 = vadd.f32 %v896, %v922
        %v935 = vadd.f32 %v897, %v922
        %v936 = vadd.f32 %v898, %v922
        %v937 = vadd.f32 %v899, %v922
        %v938 = vadd.f32 %v900, %v922
        %v939 = vadd.f32 %v901, %v922
        %v940 = vadd.f32 %v902, %v922
        %v941 = vadd.f32 %v903, %v922
        %v942 = vadd.f32 %v904, %v922
        %v943 = vadd.f32 %v905, %v922
        %v944 = vadd.f32 %v906, %v922
        %v945 = vadd.f32 %v907, %v922
        %v946 = vadd.f32 %v908, %v922
        %v947 = vadd.f32 %v909, %v922
        %v948 = vadd.f32 %v910, %v922
        %v949 = vadd.f32 %v911, %v922
        %v950 = vadd.f32 %v912, %v922
        %v951 = vadd.f32 %v913, %v922
        %v952 = vadd.f32 %v914, %v922
        %v953 = vadd.f32 %v915, %v922
        %v954 = vadd.f32 %v916, %v922
        %v955 = vadd.f32 %v917, %v922
        %v956 = vld [vmem:[#allocation5] sm:$0xff]
        %v957 = vld [vmem:[#allocation5 + $0x8] sm:$0xff]
        %v958 = vld [vmem:[#allocation5 + $0x10] sm:$0xff]
        %v959 = vld [vmem:[#allocation5 + $0x18] sm:$0xff]
        %v960 = vld [vmem:[#allocation5 + $0x20] sm:$0xff]
        %v961 = vld [vmem:[#allocation5 + $0x28] sm:$0xff]
        %v962 = vld [vmem:[#allocation5 + $0x30] sm:$0xff]
        %v963 = vld [vmem:[#allocation5 + $0x38] sm:$0xff]
        %v964 = vld [vmem:[#allocation5 + $0x40] sm:$0xff]
        %v965 = vld [vmem:[#allocation5 + $0x48] sm:$0xff]
        %v966 = vld [vmem:[#allocation5 + $0x50] sm:$0xff]
        %v967 = vld [vmem:[#allocation5 + $0x58] sm:$0xff]
        %v968 = vld [vmem:[#allocation5 + $0x60] sm:$0xff]
        %v969 = vld [vmem:[#allocation5 + $0x68] sm:$0xff]
        %v970 = vld [vmem:[#allocation5 + $0x70] sm:$0xff]
        %v971 = vld [vmem:[#allocation5 + $0x78] sm:$0xff]
        %v972 = vld [vmem:[%s6] sm:$0x1]
        %v974 = vlaneseq
        %v975 = vshrl.u32 %v974, 7
        %v976 = vsub.s32 0, %v975
        %v977 = vrot.slane %v972, %v976
        %979 = vmatprep.subr.mxu0 0.0
        %980 = vmatpush1.msra.mxu0 %v956
        %981 = vmatprep.subr.mxu0 0.0
        %982 = vmatpush1.msra.mxu0 %v957
        %983 = vmatprep.subr.mxu0 0.0
        %984 = vmatpush1.msra.mxu0 %v958
        %985 = vmatprep.subr.mxu0 0.0
        %986 = vmatpush1.msra.mxu0 %v959
        %987 = vmatprep.subr.mxu0 0.0
        %988 = vmatpush1.msra.mxu0 %v960
        %989 = vmatprep.subr.mxu0 0.0
        %990 = vmatpush1.msra.mxu0 %v961
        %991 = vmatprep.subr.mxu0 0.0
        %992 = vmatpush1.msra.mxu0 %v962
        %993 = vmatprep.subr.mxu0 0.0
        %994 = vmatpush1.msra.mxu0 %v963
        %995 = vmatprep.subr.mxu0 0.0
        %996 = vmatpush1.msra.mxu0 %v964
        %997 = vmatprep.subr.mxu0 0.0
        %998 = vmatpush1.msra.mxu0 %v965
        %999 = vmatprep.subr.mxu0 0.0
        %1000 = vmatpush1.msra.mxu0 %v966
        %1001 = vmatprep.subr.mxu0 0.0
        %1002 = vmatpush1.msra.mxu0 %v967
        %1003 = vmatprep.subr.mxu0 0.0
        %1004 = vmatpush1.msra.mxu0 %v968
        %1005 = vmatprep.subr.mxu0 0.0
        %1006 = vmatpush1.msra.mxu0 %v969
        %1007 = vmatprep.subr.mxu0 0.0
        %1008 = vmatpush1.msra.mxu0 %v970
        %1009 = vmatprep.subr.mxu0 0.0
        %1010 = vmatpush1.msra.mxu0 %v971
        %1011 = vmatprep.subr.mxu0 0.0
        %1012 = vmatpush1.msra.mxu0 0.0
        %1013 = vmatprep.subr.mxu0 0.0
        %1014 = vmatpush1.msra.mxu0 0.0
        %1015 = vmatprep.subr.mxu0 0.0
        %1016 = vmatpush1.msra.mxu0 0.0
        %1017 = vmatprep.subr.mxu0 0.0
        %1018 = vmatpush1.msra.mxu0 0.0
        %1019 = vmatprep.subr.mxu0 0.0
        %1020 = vmatpush1.msra.mxu0 0.0
        %1021 = vmatprep.subr.mxu0 0.0
        %1022 = vmatpush1.msra.mxu0 0.0
        %1023 = vmatprep.subr.mxu0 0.0
        %1024 = vmatpush1.msra.mxu0 0.0
        %1025 = vmatprep.subr.mxu0 0.0
        %1026 = vmatpush1.msra.mxu0 0.0
        %1027 = vmatprep.subr.mxu0 0.0
        %1028 = vmatpush1.msra.mxu0 0.0
        %1029 = vmatprep.subr.mxu0 0.0
        %1030 = vmatpush1.msra.mxu0 0.0
        %1031 = vmatprep.subr.mxu0 0.0
        %1032 = vmatpush1.msra.mxu0 0.0
        %1033 = vmatprep.subr.mxu0 0.0
        %1034 = vmatpush1.msra.mxu0 0.0
        %1035 = vmatprep.subr.mxu0 0.0
        %1036 = vmatpush1.msra.mxu0 0.0
        %1037 = vmatprep.subr.mxu0 0.0
        %1038 = vmatpush1.msra.mxu0 0.0
        %1039 = vmatprep.subr.mxu0 0.0
        %1040 = vmatpush1.msra.mxu0 0.0
        %1041 = vmatprep.subr.mxu0 0.0
        %1042 = vmatpush1.msra.mxu0 0.0
        %1043 = vmatprep.mubr.f32.mxu0 0.0
        %1044 = vmatmul.mubr.f32.gmra.mrb[0].mxu0 %v924
        %v1045 = vpop.f32.mrb[0].mxu0
        %v1046 = vadd.f32 %v977, %v1045
        %v1047 = vpop.f32.mrb[0].mxu0
        %1048 = vmatprep.mubr.f32.mxu0 0.0
        %1049 = vmatmul.mubr.f32.gmra.mrb[0].mxu0 %v925
        %v1050 = vpop.f32.mrb[0].mxu0
        %v1051 = vadd.f32 %v977, %v1050
        %v1052 = vpop.f32.mrb[0].mxu0
        %1053 = vmatprep.mubr.f32.mxu0 0.0
        %1054 = vmatmul.mubr.f32.gmra.mrb[0].mxu0 %v926
        %v1055 = vpop.f32.mrb[0].mxu0
        %v1056 = vadd.f32 %v977, %v1055
        %v1057 = vpop.f32.mrb[0].mxu0
        %1058 = vmatprep.mubr.f32.mxu0 0.0
        %1059 = vmatmul.mubr.f32.gmra.mrb[0].mxu0 %v927
        %v1060 = vpop.f32.mrb[0].mxu0
        %v1061 = vadd.f32 %v977, %v1060
        %v1062 = vpop.f32.mrb[0].mxu0
        %1063 = vmatprep.mubr.f32.mxu0 0.0
        %1064 = vmatmul.mubr.f32.gmra.mrb[0].mxu0 %v928
        %v1065 = vpop.f32.mrb[0].mxu0
        %v1066 = vadd.f32 %v977, %v1065
        %v1067 = vpop.f32.mrb[0].mxu0
        %1068 = vmatprep.mubr.f32.mxu0 0.0
        %1069 = vmatmul.mubr.f32.gmra.mrb[0].mxu0 %v929
        %v1070 = vpop.f32.mrb[0].mxu0
        %v1071 = vadd.f32 %v977, %v1070
        %v1072 = vpop.f32.mrb[0].mxu0
        %1073 = vmatprep.mubr.f32.mxu0 0.0
        %1074 = vmatmul.mubr.f32.gmra.mrb[0].mxu0 %v930
        %v1075 = vpop.f32.mrb[0].mxu0
        %v1076 = vadd.f32 %v977, %v1075
        %v1077 = vpop.f32.mrb[0].mxu0
        %1078 = vmatprep.mubr.f32.mxu0 0.0
        %1079 = vmatmul.mubr.f32.gmra.mrb[0].mxu0 %v931
        %v1080 = vpop.f32.mrb[0].mxu0
        %v1081 = vadd.f32 %v977, %v1080
        %v1082 = vpop.f32.mrb[0].mxu0
        %1083 = vmatprep.mubr.f32.mxu0 0.0
        %1084 = vmatmul.mubr.f32.gmra.mrb[0].mxu0 %v932
        %v1085 = vpop.f32.mrb[0].mxu0
        %v1086 = vadd.f32 %v977, %v1085
        %v1087 = vpop.f32.mrb[0].mxu0
        %1088 = vmatprep.mubr.f32.mxu0 0.0
        %1089 = vmatmul.mubr.f32.gmra.mrb[0].mxu0 %v933
        %v1090 = vpop.f32.mrb[0].mxu0
        %v1091 = vadd.f32 %v977, %v1090
        %v1092 = vpop.f32.mrb[0].mxu0
        %1093 = vmatprep.mubr.f32.mxu0 0.0
        %1094 = vmatmul.mubr.f32.gmra.mrb[0].mxu0 %v934
        %v1095 = vpop.f32.mrb[0].mxu0
        %v1096 = vadd.f32 %v977, %v1095
        %v1097 = vpop.f32.mrb[0].mxu0
        %1098 = vmatprep.mubr.f32.mxu0 0.0
        %1099 = vmatmul.mubr.f32.gmra.mrb[0].mxu0 %v935
        %v1100 = vpop.f32.mrb[0].mxu0
        %v1101 = vadd.f32 %v977, %v1100
        %v1102 = vpop.f32.mrb[0].mxu0
        %1103 = vmatprep.mubr.f32.mxu0 0.0
        %1104 = vmatmul.mubr.f32.gmra.mrb[0].mxu0 %v936
        %v1105 = vpop.f32.mrb[0].mxu0
        %v1106 = vadd.f32 %v977, %v1105
        %v1107 = vpop.f32.mrb[0].mxu0
        %1108 = vmatprep.mubr.f32.mxu0 0.0
        %1109 = vmatmul.mubr.f32.gmra.mrb[0].mxu0 %v937
        %v1110 = vpop.f32.mrb[0].mxu0
        %v1111 = vadd.f32 %v977, %v1110
        %v1112 = vpop.f32.mrb[0].mxu0
        %1113 = vmatprep.mubr.f32.mxu0 0.0
        %1114 = vmatmul.mubr.f32.gmra.mrb[0].mxu0 %v938
        %v1115 = vpop.f32.mrb[0].mxu0
        %v1116 = vadd.f32 %v977, %v1115
        %v1117 = vpop.f32.mrb[0].mxu0
        %1118 = vmatprep.mubr.f32.mxu0 0.0
        %1119 = vmatmul.mubr.f32.gmra.mrb[0].mxu0 %v939
        %v1120 = vpop.f32.mrb[0].mxu0
        %v1121 = vadd.f32 %v977, %v1120
        %v1122 = vpop.f32.mrb[0].mxu0
        %1123 = vmatprep.mubr.f32.mxu0 0.0
        %1124 = vmatmul.mubr.f32.gmra.mrb[0].mxu0 %v940
        %v1125 = vpop.f32.mrb[0].mxu0
        %v1126 = vadd.f32 %v977, %v1125
        %v1127 = vpop.f32.mrb[0].mxu0
        %1128 = vmatprep.mubr.f32.mxu0 0.0
        %1129 = vmatmul.mubr.f32.gmra.mrb[0].mxu0 %v941
        %v1130 = vpop.f32.mrb[0].mxu0
        %v1131 = vadd.f32 %v977, %v1130
        %v1132 = vpop.f32.mrb[0].mxu0
        %1133 = vmatprep.mubr.f32.mxu0 0.0
        %1134 = vmatmul.mubr.f32.gmra.mrb[0].mxu0 %v942
        %v1135 = vpop.f32.mrb[0].mxu0
        %v1136 = vadd.f32 %v977, %v1135
        %v1137 = vpop.f32.mrb[0].mxu0
        %1138 = vmatprep.mubr.f32.mxu0 0.0
        %1139 = vmatmul.mubr.f32.gmra.mrb[0].mxu0 %v943
        %v1140 = vpop.f32.mrb[0].mxu0
        %v1141 = vadd.f32 %v977, %v1140
        %v1142 = vpop.f32.mrb[0].mxu0
        %1143 = vmatprep.mubr.f32.mxu0 0.0
        %1144 = vmatmul.mubr.f32.gmra.mrb[0].mxu0 %v944
        %v1145 = vpop.f32.mrb[0].mxu0
        %v1146 = vadd.f32 %v977, %v1145
        %v1147 = vpop.f32.mrb[0].mxu0
        %1148 = vmatprep.mubr.f32.mxu0 0.0
        %1149 = vmatmul.mubr.f32.gmra.mrb[0].mxu0 %v945
        %v1150 = vpop.f32.mrb[0].mxu0
        %v1151 = vadd.f32 %v977, %v1150
        %v1152 = vpop.f32.mrb[0].mxu0
        %1153 = vmatprep.mubr.f32.mxu0 0.0
        %1154 = vmatmul.mubr.f32.gmra.mrb[0].mxu0 %v946
        %v1155 = vpop.f32.mrb[0].mxu0
        %v1156 = vadd.f32 %v977, %v1155
        %v1157 = vpop.f32.mrb[0].mxu0
        %1158 = vmatprep.mubr.f32.mxu0 0.0
        %1159 = vmatmul.mubr.f32.gmra.mrb[0].mxu0 %v947
        %v1160 = vpop.f32.mrb[0].mxu0
        %v1161 = vadd.f32 %v977, %v1160
        %v1162 = vpop.f32.mrb[0].mxu0
        %1163 = vmatprep.mubr.f32.mxu0 0.0
        %1164 = vmatmul.mubr.f32.gmra.mrb[0].mxu0 %v948
        %v1165 = vpop.f32.mrb[0].mxu0
        %v1166 = vadd.f32 %v977, %v1165
        %v1167 = vpop.f32.mrb[0].mxu0
        %1168 = vmatprep.mubr.f32.mxu0 0.0
        %1169 = vmatmul.mubr.f32.gmra.mrb[0].mxu0 %v949
        %v1170 = vpop.f32.mrb[0].mxu0
        %v1171 = vadd.f32 %v977, %v1170
        %v1172 = vpop.f32.mrb[0].mxu0
        %1173 = vmatprep.mubr.f32.mxu0 0.0
        %1174 = vmatmul.mubr.f32.gmra.mrb[0].mxu0 %v950
        %v1175 = vpop.f32.mrb[0].mxu0
        %v1176 = vadd.f32 %v977, %v1175
        %v1177 = vpop.f32.mrb[0].mxu0
        %1178 = vmatprep.mubr.f32.mxu0 0.0
        %1179 = vmatmul.mubr.f32.gmra.mrb[0].mxu0 %v951
        %v1180 = vpop.f32.mrb[0].mxu0
        %v1181 = vadd.f32 %v977, %v1180
        %v1182 = vpop.f32.mrb[0].mxu0
        %1183 = vmatprep.mubr.f32.mxu0 0.0
        %1184 = vmatmul.mubr.f32.gmra.mrb[0].mxu0 %v952
        %v1185 = vpop.f32.mrb[0].mxu0
        %v1186 = vadd.f32 %v977, %v1185
        %v1187 = vpop.f32.mrb[0].mxu0
        %1188 = vmatprep.mubr.f32.mxu0 0.0
        %1189 = vmatmul.mubr.f32.gmra.mrb[0].mxu0 %v953
        %v1190 = vpop.f32.mrb[0].mxu0
        %v1191 = vadd.f32 %v977, %v1190
        %v1192 = vpop.f32.mrb[0].mxu0
        %1193 = vmatprep.mubr.f32.mxu0 0.0
        %1194 = vmatmul.mubr.f32.gmra.mrb[0].mxu0 %v954
        %v1195 = vpop.f32.mrb[0].mxu0
        %v1196 = vadd.f32 %v977, %v1195
        %v1197 = vpop.f32.mrb[0].mxu0
        %1198 = vmatprep.mubr.f32.mxu0 0.0
        %1199 = vmatmul.mubr.f32.gmra.mrb[0].mxu0 %v955
        %v1200 = vpop.f32.mrb[0].mxu0
        %v1201 = vadd.f32 %v977, %v1200
        %v1202 = vpop.f32.mrb[0].mxu0
        %1203 = vdwg.mxu0
        %v1204 = vld [vmem:[#allocation7] sm:$0xff]
        %v1205 = vld [vmem:[#allocation7 + $0x8] sm:$0xff]
        %v1206 = vld [vmem:[#allocation7 + $0x10] sm:$0xff]
        %v1207 = vld [vmem:[#allocation7 + $0x18] sm:$0xff]
        %v1208 = vld [vmem:[#allocation7 + $0x20] sm:$0xff]
        %v1209 = vld [vmem:[#allocation7 + $0x28] sm:$0xff]
        %v1210 = vld [vmem:[#allocation7 + $0x30] sm:$0xff]
        %v1211 = vld [vmem:[#allocation7 + $0x38] sm:$0xff]
        %v1212 = vld [vmem:[#allocation7 + $0x40] sm:$0xff]
        %v1213 = vld [vmem:[#allocation7 + $0x48] sm:$0xff]
        %v1214 = vld [vmem:[#allocation7 + $0x50] sm:$0xff]
        %v1215 = vld [vmem:[#allocation7 + $0x58] sm:$0xff]
        %v1216 = vld [vmem:[#allocation7 + $0x60] sm:$0xff]
        %v1217 = vld [vmem:[#allocation7 + $0x68] sm:$0xff]
        %v1218 = vld [vmem:[#allocation7 + $0x70] sm:$0xff]
        %v1219 = vld [vmem:[#allocation7 + $0x78] sm:$0xff]
        %v1220 = vld [vmem:[%s7] sm:$0x1]
        %v1222 = vlaneseq
        %v1223 = vshrl.u32 %v1222, 7
        %v1224 = vsub.s32 0, %v1223
        %v1225 = vrot.slane %v1220, %v1224
        %1227 = vmatprep.subr.mxu0 0.0
        %1228 = vmatpush1.msra.mxu0 %v1204
        %1229 = vmatprep.subr.mxu0 0.0
        %1230 = vmatpush1.msra.mxu0 %v1205
        %1231 = vmatprep.subr.mxu0 0.0
        %1232 = vmatpush1.msra.mxu0 %v1206
        %1233 = vmatprep.subr.mxu0 0.0
        %1234 = vmatpush1.msra.mxu0 %v1207
        %1235 = vmatprep.subr.mxu0 0.0
        %1236 = vmatpush1.msra.mxu0 %v1208
        %1237 = vmatprep.subr.mxu0 0.0
        %1238 = vmatpush1.msra.mxu0 %v1209
        %1239 = vmatprep.subr.mxu0 0.0
        %1240 = vmatpush1.msra.mxu0 %v1210
        %1241 = vmatprep.subr.mxu0 0.0
        %1242 = vmatpush1.msra.mxu0 %v1211
        %1243 = vmatprep.subr.mxu0 0.0
        %1244 = vmatpush1.msra.mxu0 %v1212
        %1245 = vmatprep.subr.mxu0 0.0
        %1246 = vmatpush1.msra.mxu0 %v1213
        %1247 = vmatprep.subr.mxu0 0.0
        %1248 = vmatpush1.msra.mxu0 %v1214
        %1249 = vmatprep.subr.mxu0 0.0
        %1250 = vmatpush1.msra.mxu0 %v1215
        %1251 = vmatprep.subr.mxu0 0.0
        %1252 = vmatpush1.msra.mxu0 %v1216
        %1253 = vmatprep.subr.mxu0 0.0
        %1254 = vmatpush1.msra.mxu0 %v1217
        %1255 = vmatprep.subr.mxu0 0.0
        %1256 = vmatpush1.msra.mxu0 %v1218
        %1257 = vmatprep.subr.mxu0 0.0
        %1258 = vmatpush1.msra.mxu0 %v1219
        %1259 = vmatprep.subr.mxu0 0.0
        %1260 = vmatpush1.msra.mxu0 0.0
        %1261 = vmatprep.subr.mxu0 0.0
        %1262 = vmatpush1.msra.mxu0 0.0
        %1263 = vmatprep.subr.mxu0 0.0
        %1264 = vmatpush1.msra.mxu0 0.0
        %1265 = vmatprep.subr.mxu0 0.0
        %1266 = vmatpush1.msra.mxu0 0.0
        %1267 = vmatprep.subr.mxu0 0.0
        %1268 = vmatpush1.msra.mxu0 0.0
        %1269 = vmatprep.subr.mxu0 0.0
        %1270 = vmatpush1.msra.mxu0 0.0
        %1271 = vmatprep.subr.mxu0 0.0
        %1272 = vmatpush1.msra.mxu0 0.0
        %1273 = vmatprep.subr.mxu0 0.0
        %1274 = vmatpush1.msra.mxu0 0.0
        %1275 = vmatprep.subr.mxu0 0.0
        %1276 = vmatpush1.msra.mxu0 0.0
        %1277 = vmatprep.subr.mxu0 0.0
        %1278 = vmatpush1.msra.mxu0 0.0
        %1279 = vmatprep.subr.mxu0 0.0
        %1280 = vmatpush1.msra.mxu0 0.0
        %1281 = vmatprep.subr.mxu0 0.0
        %1282 = vmatpush1.msra.mxu0 0.0
        %1283 = vmatprep.subr.mxu0 0.0
        %1284 = vmatpush1.msra.mxu0 0.0
        %1285 = vmatprep.subr.mxu0 0.0
        %1286 = vmatpush1.msra.mxu0 0.0
        %1287 = vmatprep.subr.mxu0 0.0
        %1288 = vmatpush1.msra.mxu0 0.0
        %1289 = vmatprep.subr.mxu0 0.0
        %1290 = vmatpush1.msra.mxu0 0.0
        %1291 = vmatprep.mubr.f32.mxu0 0.0
        %1292 = vmatmul.mubr.f32.gmra.mrb[0].mxu0 %v924
        %v1293 = vpop.f32.mrb[0].mxu0
        %v1294 = vadd.f32 %v1225, %v1293
        %v1295 = vpop.f32.mrb[0].mxu0
        %1296 = vmatprep.mubr.f32.mxu0 0.0
        %1297 = vmatmul.mubr.f32.gmra.mrb[0].mxu0 %v925
        %v1298 = vpop.f32.mrb[0].mxu0
        %v1299 = vadd.f32 %v1225, %v1298
        %v1300 = vpop.f32.mrb[0].mxu0
        %1301 = vmatprep.mubr.f32.mxu0 0.0
        %1302 = vmatmul.mubr.f32.gmra.mrb[0].mxu0 %v926
        %v1303 = vpop.f32.mrb[0].mxu0
        %v1304 = vadd.f32 %v1225, %v1303
        %v1305 = vpop.f32.mrb[0].mxu0
        %1306 = vmatprep.mubr.f32.mxu0 0.0
        %1307 = vmatmul.mubr.f32.gmra.mrb[0].mxu0 %v927
        %v1308 = vpop.f32.mrb[0].mxu0
        %v1309 = vadd.f32 %v1225, %v1308
        %v1310 = vpop.f32.mrb[0].mxu0
        %1311 = vmatprep.mubr.f32.mxu0 0.0
        %1312 = vmatmul.mubr.f32.gmra.mrb[0].mxu0 %v928
        %v1313 = vpop.f32.mrb[0].mxu0
        %v1314 = vadd.f32 %v1225, %v1313
        %v1315 = vpop.f32.mrb[0].mxu0
        %1316 = vmatprep.mubr.f32.mxu0 0.0
        %1317 = vmatmul.mubr.f32.gmra.mrb[0].mxu0 %v929
        %v1318 = vpop.f32.mrb[0].mxu0
        %v1319 = vadd.f32 %v1225, %v1318
        %v1320 = vpop.f32.mrb[0].mxu0
        %1321 = vmatprep.mubr.f32.mxu0 0.0
        %1322 = vmatmul.mubr.f32.gmra.mrb[0].mxu0 %v930
        %v1323 = vpop.f32.mrb[0].mxu0
        %v1324 = vadd.f32 %v1225, %v1323
        %v1325 = vpop.f32.mrb[0].mxu0
        %1326 = vmatprep.mubr.f32.mxu0 0.0
        %1327 = vmatmul.mubr.f32.gmra.mrb[0].mxu0 %v931
        %v1328 = vpop.f32.mrb[0].mxu0
        %v1329 = vadd.f32 %v1225, %v1328
        %v1330 = vpop.f32.mrb[0].mxu0
        %1331 = vmatprep.mubr.f32.mxu0 0.0
        %1332 = vmatmul.mubr.f32.gmra.mrb[0].mxu0 %v932
        %v1333 = vpop.f32.mrb[0].mxu0
        %v1334 = vadd.f32 %v1225, %v1333
        %v1335 = vpop.f32.mrb[0].mxu0
        %1336 = vmatprep.mubr.f32.mxu0 0.0
        %1337 = vmatmul.mubr.f32.gmra.mrb[0].mxu0 %v933
        %v1338 = vpop.f32.mrb[0].mxu0
        %v1339 = vadd.f32 %v1225, %v1338
        %v1340 = vpop.f32.mrb[0].mxu0
        %1341 = vmatprep.mubr.f32.mxu0 0.0
        %1342 = vmatmul.mubr.f32.gmra.mrb[0].mxu0 %v934
        %v1343 = vpop.f32.mrb[0].mxu0
        %v1344 = vadd.f32 %v1225, %v1343
        %v1345 = vpop.f32.mrb[0].mxu0
        %1346 = vmatprep.mubr.f32.mxu0 0.0
        %1347 = vmatmul.mubr.f32.gmra.mrb[0].mxu0 %v935
        %v1348 = vpop.f32.mrb[0].mxu0
        %v1349 = vadd.f32 %v1225, %v1348
        %v1350 = vpop.f32.mrb[0].mxu0
        %1351 = vmatprep.mubr.f32.mxu0 0.0
        %1352 = vmatmul.mubr.f32.gmra.mrb[0].mxu0 %v936
        %v1353 = vpop.f32.mrb[0].mxu0
        %v1354 = vadd.f32 %v1225, %v1353
        %v1355 = vpop.f32.mrb[0].mxu0
        %1356 = vmatprep.mubr.f32.mxu0 0.0
        %1357 = vmatmul.mubr.f32.gmra.mrb[0].mxu0 %v937
        %v1358 = vpop.f32.mrb[0].mxu0
        %v1359 = vadd.f32 %v1225, %v1358
        %v1360 = vpop.f32.mrb[0].mxu0
        %1361 = vmatprep.mubr.f32.mxu0 0.0
        %1362 = vmatmul.mubr.f32.gmra.mrb[0].mxu0 %v938
        %v1363 = vpop.f32.mrb[0].mxu0
        %v1364 = vadd.f32 %v1225, %v1363
        %v1365 = vpop.f32.mrb[0].mxu0
        %1366 = vmatprep.mubr.f32.mxu0 0.0
        %1367 = vmatmul.mubr.f32.gmra.mrb[0].mxu0 %v939
        %v1368 = vpop.f32.mrb[0].mxu0
        %v1369 = vadd.f32 %v1225, %v1368
        %v1370 = vpop.f32.mrb[0].mxu0
        %1371 = vmatprep.mubr.f32.mxu0 0.0
        %1372 = vmatmul.mubr.f32.gmra.mrb[0].mxu0 %v940
        %v1373 = vpop.f32.mrb[0].mxu0
        %v1374 = vadd.f32 %v1225, %v1373
        %v1375 = vpop.f32.mrb[0].mxu0
        %1376 = vmatprep.mubr.f32.mxu0 0.0
        %1377 = vmatmul.mubr.f32.gmra.mrb[0].mxu0 %v941
        %v1378 = vpop.f32.mrb[0].mxu0
        %v1379 = vadd.f32 %v1225, %v1378
        %v1380 = vpop.f32.mrb[0].mxu0
        %1381 = vmatprep.mubr.f32.mxu0 0.0
        %1382 = vmatmul.mubr.f32.gmra.mrb[0].mxu0 %v942
        %v1383 = vpop.f32.mrb[0].mxu0
        %v1384 = vadd.f32 %v1225, %v1383
        %v1385 = vpop.f32.mrb[0].mxu0
        %1386 = vmatprep.mubr.f32.mxu0 0.0
        %1387 = vmatmul.mubr.f32.gmra.mrb[0].mxu0 %v943
        %v1388 = vpop.f32.mrb[0].mxu0
        %v1389 = vadd.f32 %v1225, %v1388
        %v1390 = vpop.f32.mrb[0].mxu0
        %1391 = vmatprep.mubr.f32.mxu0 0.0
        %1392 = vmatmul.mubr.f32.gmra.mrb[0].mxu0 %v944
        %v1393 = vpop.f32.mrb[0].mxu0
        %v1394 = vadd.f32 %v1225, %v1393
        %v1395 = vpop.f32.mrb[0].mxu0
        %1396 = vmatprep.mubr.f32.mxu0 0.0
        %1397 = vmatmul.mubr.f32.gmra.mrb[0].mxu0 %v945
        %v1398 = vpop.f32.mrb[0].mxu0
        %v1399 = vadd.f32 %v1225, %v1398
        %v1400 = vpop.f32.mrb[0].mxu0
        %1401 = vmatprep.mubr.f32.mxu0 0.0
        %1402 = vmatmul.mubr.f32.gmra.mrb[0].mxu0 %v946
        %v1403 = vpop.f32.mrb[0].mxu0
        %v1404 = vadd.f32 %v1225, %v1403
        %v1405 = vpop.f32.mrb[0].mxu0
        %1406 = vmatprep.mubr.f32.mxu0 0.0
        %1407 = vmatmul.mubr.f32.gmra.mrb[0].mxu0 %v947
        %v1408 = vpop.f32.mrb[0].mxu0
        %v1409 = vadd.f32 %v1225, %v1408
        %v1410 = vpop.f32.mrb[0].mxu0
        %1411 = vmatprep.mubr.f32.mxu0 0.0
        %1412 = vmatmul.mubr.f32.gmra.mrb[0].mxu0 %v948
        %v1413 = vpop.f32.mrb[0].mxu0
        %v1414 = vadd.f32 %v1225, %v1413
        %v1415 = vpop.f32.mrb[0].mxu0
        %1416 = vmatprep.mubr.f32.mxu0 0.0
        %1417 = vmatmul.mubr.f32.gmra.mrb[0].mxu0 %v949
        %v1418 = vpop.f32.mrb[0].mxu0
        %v1419 = vadd.f32 %v1225, %v1418
        %v1420 = vpop.f32.mrb[0].mxu0
        %1421 = vmatprep.mubr.f32.mxu0 0.0
        %1422 = vmatmul.mubr.f32.gmra.mrb[0].mxu0 %v950
        %v1423 = vpop.f32.mrb[0].mxu0
        %v1424 = vadd.f32 %v1225, %v1423
        %v1425 = vpop.f32.mrb[0].mxu0
        %1426 = vmatprep.mubr.f32.mxu0 0.0
        %1427 = vmatmul.mubr.f32.gmra.mrb[0].mxu0 %v951
        %v1428 = vpop.f32.mrb[0].mxu0
        %v1429 = vadd.f32 %v1225, %v1428
        %v1430 = vpop.f32.mrb[0].mxu0
        %1431 = vmatprep.mubr.f32.mxu0 0.0
        %1432 = vmatmul.mubr.f32.gmra.mrb[0].mxu0 %v952
        %v1433 = vpop.f32.mrb[0].mxu0
        %v1434 = vadd.f32 %v1225, %v1433
        %v1435 = vpop.f32.mrb[0].mxu0
        %1436 = vmatprep.mubr.f32.mxu0 0.0
        %1437 = vmatmul.mubr.f32.gmra.mrb[0].mxu0 %v953
        %v1438 = vpop.f32.mrb[0].mxu0
        %v1439 = vadd.f32 %v1225, %v1438
        %v1440 = vpop.f32.mrb[0].mxu0
        %1441 = vmatprep.mubr.f32.mxu0 0.0
        %1442 = vmatmul.mubr.f32.gmra.mrb[0].mxu0 %v954
        %v1443 = vpop.f32.mrb[0].mxu0
        %v1444 = vadd.f32 %v1225, %v1443
        %v1445 = vpop.f32.mrb[0].mxu0
        %1446 = vmatprep.mubr.f32.mxu0 0.0
        %1447 = vmatmul.mubr.f32.gmra.mrb[0].mxu0 %v955
        %v1448 = vpop.f32.mrb[0].mxu0
        %v1449 = vadd.f32 %v1225, %v1448
        %v1450 = vpop.f32.mrb[0].mxu0
        %1451 = vdwg.mxu0
        %v1452 = vld [vmem:[#allocation8] sm:$0xff]
        %v1453 = vld [vmem:[#allocation8 + $0x8] sm:$0xff]
        %v1454 = vld [vmem:[#allocation8 + $0x10] sm:$0xff]
        %v1455 = vld [vmem:[#allocation8 + $0x18] sm:$0xff]
        %v1456 = vld [vmem:[#allocation8 + $0x20] sm:$0xff]
        %v1457 = vld [vmem:[#allocation8 + $0x28] sm:$0xff]
        %v1458 = vld [vmem:[#allocation8 + $0x30] sm:$0xff]
        %v1459 = vld [vmem:[#allocation8 + $0x38] sm:$0xff]
        %v1460 = vld [vmem:[#allocation8 + $0x40] sm:$0xff]
        %v1461 = vld [vmem:[#allocation8 + $0x48] sm:$0xff]
        %v1462 = vld [vmem:[#allocation8 + $0x50] sm:$0xff]
        %v1463 = vld [vmem:[#allocation8 + $0x58] sm:$0xff]
        %v1464 = vld [vmem:[#allocation8 + $0x60] sm:$0xff]
        %v1465 = vld [vmem:[#allocation8 + $0x68] sm:$0xff]
        %v1466 = vld [vmem:[#allocation8 + $0x70] sm:$0xff]
        %v1467 = vld [vmem:[#allocation8 + $0x78] sm:$0xff]
        %v1468 = vld [vmem:[%s8] sm:$0x1]
        %v1470 = vlaneseq
        %v1471 = vshrl.u32 %v1470, 7
        %v1472 = vsub.s32 0, %v1471
        %v1473 = vrot.slane %v1468, %v1472
        %1475 = vmatprep.subr.mxu0 0.0
        %1476 = vmatpush1.msra.mxu0 %v1452
        %1477 = vmatprep.subr.mxu0 0.0
        %1478 = vmatpush1.msra.mxu0 %v1453
        %1479 = vmatprep.subr.mxu0 0.0
        %1480 = vmatpush1.msra.mxu0 %v1454
        %1481 = vmatprep.subr.mxu0 0.0
        %1482 = vmatpush1.msra.mxu0 %v1455
        %1483 = vmatprep.subr.mxu0 0.0
        %1484 = vmatpush1.msra.mxu0 %v1456
        %1485 = vmatprep.subr.mxu0 0.0
        %1486 = vmatpush1.msra.mxu0 %v1457
        %1487 = vmatprep.subr.mxu0 0.0
        %1488 = vmatpush1.msra.mxu0 %v1458
        %1489 = vmatprep.subr.mxu0 0.0
        %1490 = vmatpush1.msra.mxu0 %v1459
        %1491 = vmatprep.subr.mxu0 0.0
        %1492 = vmatpush1.msra.mxu0 %v1460
        %1493 = vmatprep.subr.mxu0 0.0
        %1494 = vmatpush1.msra.mxu0 %v1461
        %1495 = vmatprep.subr.mxu0 0.0
        %1496 = vmatpush1.msra.mxu0 %v1462
        %1497 = vmatprep.subr.mxu0 0.0
        %1498 = vmatpush1.msra.mxu0 %v1463
        %1499 = vmatprep.subr.mxu0 0.0
        %1500 = vmatpush1.msra.mxu0 %v1464
        %1501 = vmatprep.subr.mxu0 0.0
        %1502 = vmatpush1.msra.mxu0 %v1465
        %1503 = vmatprep.subr.mxu0 0.0
        %1504 = vmatpush1.msra.mxu0 %v1466
        %1505 = vmatprep.subr.mxu0 0.0
        %1506 = vmatpush1.msra.mxu0 %v1467
        %1507 = vmatprep.subr.mxu0 0.0
        %1508 = vmatpush1.msra.mxu0 0.0
        %1509 = vmatprep.subr.mxu0 0.0
        %1510 = vmatpush1.msra.mxu0 0.0
        %1511 = vmatprep.subr.mxu0 0.0
        %1512 = vmatpush1.msra.mxu0 0.0
        %1513 = vmatprep.subr.mxu0 0.0
        %1514 = vmatpush1.msra.mxu0 0.0
        %1515 = vmatprep.subr.mxu0 0.0
        %1516 = vmatpush1.msra.mxu0 0.0
        %1517 = vmatprep.subr.mxu0 0.0
        %1518 = vmatpush1.msra.mxu0 0.0
        %1519 = vmatprep.subr.mxu0 0.0
        %1520 = vmatpush1.msra.mxu0 0.0
        %1521 = vmatprep.subr.mxu0 0.0
        %1522 = vmatpush1.msra.mxu0 0.0
        %1523 = vmatprep.subr.mxu0 0.0
        %1524 = vmatpush1.msra.mxu0 0.0
        %1525 = vmatprep.subr.mxu0 0.0
        %1526 = vmatpush1.msra.mxu0 0.0
        %1527 = vmatprep.subr.mxu0 0.0
        %1528 = vmatpush1.msra.mxu0 0.0
        %1529 = vmatprep.subr.mxu0 0.0
        %1530 = vmatpush1.msra.mxu0 0.0
        %1531 = vmatprep.subr.mxu0 0.0
        %1532 = vmatpush1.msra.mxu0 0.0
        %1533 = vmatprep.subr.mxu0 0.0
        %1534 = vmatpush1.msra.mxu0 0.0
        %1535 = vmatprep.subr.mxu0 0.0
        %1536 = vmatpush1.msra.mxu0 0.0
        %1537 = vmatprep.subr.mxu0 0.0
        %1538 = vmatpush1.msra.mxu0 0.0
        %1539 = vmatprep.mubr.f32.mxu0 0.0
        %1540 = vmatmul.mubr.f32.gmra.mrb[0].mxu0 %v924
        %v1541 = vpop.f32.mrb[0].mxu0
        %v1542 = vadd.f32 %v1473, %v1541
        %v1543 = vpop.f32.mrb[0].mxu0
        %1544 = vmatprep.mubr.f32.mxu0 0.0
        %1545 = vmatmul.mubr.f32.gmra.mrb[0].mxu0 %v925
        %v1546 = vpop.f32.mrb[0].mxu0
        %v1547 = vadd.f32 %v1473, %v1546
        %v1548 = vpop.f32.mrb[0].mxu0
        %1549 = vmatprep.mubr.f32.mxu0 0.0
        %1550 = vmatmul.mubr.f32.gmra.mrb[0].mxu0 %v926
        %v1551 = vpop.f32.mrb[0].mxu0
        %v1552 = vadd.f32 %v1473, %v1551
        %v1553 = vpop.f32.mrb[0].mxu0
        %1554 = vmatprep.mubr.f32.mxu0 0.0
        %1555 = vmatmul.mubr.f32.gmra.mrb[0].mxu0 %v927
        %v1556 = vpop.f32.mrb[0].mxu0
        %v1557 = vadd.f32 %v1473, %v1556
        %v1558 = vpop.f32.mrb[0].mxu0
        %1559 = vmatprep.mubr.f32.mxu0 0.0
        %1560 = vmatmul.mubr.f32.gmra.mrb[0].mxu0 %v928
        %v1561 = vpop.f32.mrb[0].mxu0
        %v1562 = vadd.f32 %v1473, %v1561
        %v1563 = vpop.f32.mrb[0].mxu0
        %1564 = vmatprep.mubr.f32.mxu0 0.0
        %1565 = vmatmul.mubr.f32.gmra.mrb[0].mxu0 %v929
        %v1566 = vpop.f32.mrb[0].mxu0
        %v1567 = vadd.f32 %v1473, %v1566
        %v1568 = vpop.f32.mrb[0].mxu0
        %1569 = vmatprep.mubr.f32.mxu0 0.0
        %1570 = vmatmul.mubr.f32.gmra.mrb[0].mxu0 %v930
        %v1571 = vpop.f32.mrb[0].mxu0
        %v1572 = vadd.f32 %v1473, %v1571
        %v1573 = vpop.f32.mrb[0].mxu0
        %1574 = vmatprep.mubr.f32.mxu0 0.0
        %1575 = vmatmul.mubr.f32.gmra.mrb[0].mxu0 %v931
        %v1576 = vpop.f32.mrb[0].mxu0
        %v1577 = vadd.f32 %v1473, %v1576
        %v1578 = vpop.f32.mrb[0].mxu0
        %1579 = vmatprep.mubr.f32.mxu0 0.0
        %1580 = vmatmul.mubr.f32.gmra.mrb[0].mxu0 %v932
        %v1581 = vpop.f32.mrb[0].mxu0
        %v1582 = vadd.f32 %v1473, %v1581
        %v1583 = vpop.f32.mrb[0].mxu0
        %1584 = vmatprep.mubr.f32.mxu0 0.0
        %1585 = vmatmul.mubr.f32.gmra.mrb[0].mxu0 %v933
        %v1586 = vpop.f32.mrb[0].mxu0
        %v1587 = vadd.f32 %v1473, %v1586
        %v1588 = vpop.f32.mrb[0].mxu0
        %1589 = vmatprep.mubr.f32.mxu0 0.0
        %1590 = vmatmul.mubr.f32.gmra.mrb[0].mxu0 %v934
        %v1591 = vpop.f32.mrb[0].mxu0
        %v1592 = vadd.f32 %v1473, %v1591
        %v1593 = vpop.f32.mrb[0].mxu0
        %1594 = vmatprep.mubr.f32.mxu0 0.0
        %1595 = vmatmul.mubr.f32.gmra.mrb[0].mxu0 %v935
        %v1596 = vpop.f32.mrb[0].mxu0
        %v1597 = vadd.f32 %v1473, %v1596
        %v1598 = vpop.f32.mrb[0].mxu0
        %1599 = vmatprep.mubr.f32.mxu0 0.0
        %1600 = vmatmul.mubr.f32.gmra.mrb[0].mxu0 %v936
        %v1601 = vpop.f32.mrb[0].mxu0
        %v1602 = vadd.f32 %v1473, %v1601
        %v1603 = vpop.f32.mrb[0].mxu0
        %1604 = vmatprep.mubr.f32.mxu0 0.0
        %1605 = vmatmul.mubr.f32.gmra.mrb[0].mxu0 %v937
        %v1606 = vpop.f32.mrb[0].mxu0
        %v1607 = vadd.f32 %v1473, %v1606
        %v1608 = vpop.f32.mrb[0].mxu0
        %1609 = vmatprep.mubr.f32.mxu0 0.0
        %1610 = vmatmul.mubr.f32.gmra.mrb[0].mxu0 %v938
        %v1611 = vpop.f32.mrb[0].mxu0
        %v1612 = vadd.f32 %v1473, %v1611
        %v1613 = vpop.f32.mrb[0].mxu0
        %1614 = vmatprep.mubr.f32.mxu0 0.0
        %1615 = vmatmul.mubr.f32.gmra.mrb[0].mxu0 %v939
        %v1616 = vpop.f32.mrb[0].mxu0
        %v1617 = vadd.f32 %v1473, %v1616
        %v1618 = vpop.f32.mrb[0].mxu0
        %1619 = vmatprep.mubr.f32.mxu0 0.0
        %1620 = vmatmul.mubr.f32.gmra.mrb[0].mxu0 %v940
        %v1621 = vpop.f32.mrb[0].mxu0
        %v1622 = vadd.f32 %v1473, %v1621
        %v1623 = vpop.f32.mrb[0].mxu0
        %1624 = vmatprep.mubr.f32.mxu0 0.0
        %1625 = vmatmul.mubr.f32.gmra.mrb[0].mxu0 %v941
        %v1626 = vpop.f32.mrb[0].mxu0
        %v1627 = vadd.f32 %v1473, %v1626
        %v1628 = vpop.f32.mrb[0].mxu0
        %1629 = vmatprep.mubr.f32.mxu0 0.0
        %1630 = vmatmul.mubr.f32.gmra.mrb[0].mxu0 %v942
        %v1631 = vpop.f32.mrb[0].mxu0
        %v1632 = vadd.f32 %v1473, %v1631
        %v1633 = vpop.f32.mrb[0].mxu0
        %1634 = vmatprep.mubr.f32.mxu0 0.0
        %1635 = vmatmul.mubr.f32.gmra.mrb[0].mxu0 %v943
        %v1636 = vpop.f32.mrb[0].mxu0
        %v1637 = vadd.f32 %v1473, %v1636
        %v1638 = vpop.f32.mrb[0].mxu0
        %1639 = vmatprep.mubr.f32.mxu0 0.0
        %1640 = vmatmul.mubr.f32.gmra.mrb[0].mxu0 %v944
        %v1641 = vpop.f32.mrb[0].mxu0
        %v1642 = vadd.f32 %v1473, %v1641
        %v1643 = vpop.f32.mrb[0].mxu0
        %1644 = vmatprep.mubr.f32.mxu0 0.0
        %1645 = vmatmul.mubr.f32.gmra.mrb[0].mxu0 %v945
        %v1646 = vpop.f32.mrb[0].mxu0
        %v1647 = vadd.f32 %v1473, %v1646
        %v1648 = vpop.f32.mrb[0].mxu0
        %1649 = vmatprep.mubr.f32.mxu0 0.0
        %1650 = vmatmul.mubr.f32.gmra.mrb[0].mxu0 %v946
        %v1651 = vpop.f32.mrb[0].mxu0
        %v1652 = vadd.f32 %v1473, %v1651
        %v1653 = vpop.f32.mrb[0].mxu0
        %1654 = vmatprep.mubr.f32.mxu0 0.0
        %1655 = vmatmul.mubr.f32.gmra.mrb[0].mxu0 %v947
        %v1656 = vpop.f32.mrb[0].mxu0
        %v1657 = vadd.f32 %v1473, %v1656
        %v1658 = vpop.f32.mrb[0].mxu0
        %1659 = vmatprep.mubr.f32.mxu0 0.0
        %1660 = vmatmul.mubr.f32.gmra.mrb[0].mxu0 %v948
        %v1661 = vpop.f32.mrb[0].mxu0
        %v1662 = vadd.f32 %v1473, %v1661
        %v1663 = vpop.f32.mrb[0].mxu0
        %1664 = vmatprep.mubr.f32.mxu0 0.0
        %1665 = vmatmul.mubr.f32.gmra.mrb[0].mxu0 %v949
        %v1666 = vpop.f32.mrb[0].mxu0
        %v1667 = vadd.f32 %v1473, %v1666
        %v1668 = vpop.f32.mrb[0].mxu0
        %1669 = vmatprep.mubr.f32.mxu0 0.0
        %1670 = vmatmul.mubr.f32.gmra.mrb[0].mxu0 %v950
        %v1671 = vpop.f32.mrb[0].mxu0
        %v1672 = vadd.f32 %v1473, %v1671
        %v1673 = vpop.f32.mrb[0].mxu0
        %1674 = vmatprep.mubr.f32.mxu0 0.0
        %1675 = vmatmul.mubr.f32.gmra.mrb[0].mxu0 %v951
        %v1676 = vpop.f32.mrb[0].mxu0
        %v1677 = vadd.f32 %v1473, %v1676
        %v1678 = vpop.f32.mrb[0].mxu0
        %1679 = vmatprep.mubr.f32.mxu0 0.0
        %1680 = vmatmul.mubr.f32.gmra.mrb[0].mxu0 %v952
        %v1681 = vpop.f32.mrb[0].mxu0
        %v1682 = vadd.f32 %v1473, %v1681
        %v1683 = vpop.f32.mrb[0].mxu0
        %1684 = vmatprep.mubr.f32.mxu0 0.0
        %1685 = vmatmul.mubr.f32.gmra.mrb[0].mxu0 %v953
        %v1686 = vpop.f32.mrb[0].mxu0
        %v1687 = vadd.f32 %v1473, %v1686
        %v1688 = vpop.f32.mrb[0].mxu0
        %1689 = vmatprep.mubr.f32.mxu0 0.0
        %1690 = vmatmul.mubr.f32.gmra.mrb[0].mxu0 %v954
        %v1691 = vpop.f32.mrb[0].mxu0
        %v1692 = vadd.f32 %v1473, %v1691
        %v1693 = vpop.f32.mrb[0].mxu0
        %1694 = vmatprep.mubr.f32.mxu0 0.0
        %1695 = vmatmul.mubr.f32.gmra.mrb[0].mxu0 %v955
        %v1696 = vpop.f32.mrb[0].mxu0
        %v1697 = vadd.f32 %v1473, %v1696
        %v1698 = vpop.f32.mrb[0].mxu0
        %1699 = vdwg.mxu0
        %1700 = vst [vmem:[%s474] sm:$0xff] %v1046
        %1701 = vst [vmem:[%s474 + $0x8] sm:$0xff] %v1051
        %1702 = vst [vmem:[%s474 + $0x10] sm:$0xff] %v1056
        %1703 = vst [vmem:[%s474 + $0x18] sm:$0xff] %v1061
        %1704 = vst [vmem:[%s474 + $0x20] sm:$0xff] %v1066
        %1705 = vst [vmem:[%s474 + $0x28] sm:$0xff] %v1071
        %1706 = vst [vmem:[%s474 + $0x30] sm:$0xff] %v1076
        %1707 = vst [vmem:[%s474 + $0x38] sm:$0xff] %v1081
        %1708 = vst [vmem:[%s474 + $0x40] sm:$0xff] %v1086
        %1709 = vst [vmem:[%s474 + $0x48] sm:$0xff] %v1091
        %1710 = vst [vmem:[%s474 + $0x50] sm:$0xff] %v1096
        %1711 = vst [vmem:[%s474 + $0x58] sm:$0xff] %v1101
        %1712 = vst [vmem:[%s474 + $0x60] sm:$0xff] %v1106
        %1713 = vst [vmem:[%s474 + $0x68] sm:$0xff] %v1111
        %1714 = vst [vmem:[%s474 + $0x70] sm:$0xff] %v1116
        %1715 = vst [vmem:[%s474 + $0x78] sm:$0xff] %v1121
        %1716 = vst [vmem:[%s474 + $0x80] sm:$0xff] %v1126
        %1717 = vst [vmem:[%s474 + $0x88] sm:$0xff] %v1131
        %1718 = vst [vmem:[%s474 + $0x90] sm:$0xff] %v1136
        %1719 = vst [vmem:[%s474 + $0x98] sm:$0xff] %v1141
        %1720 = vst [vmem:[%s474 + $0xa0] sm:$0xff] %v1146
        %1721 = vst [vmem:[%s474 + $0xa8] sm:$0xff] %v1151
        %1722 = vst [vmem:[%s474 + $0xb0] sm:$0xff] %v1156
        %1723 = vst [vmem:[%s474 + $0xb8] sm:$0xff] %v1161
        %1724 = vst [vmem:[%s474 + $0xc0] sm:$0xff] %v1166
        %1725 = vst [vmem:[%s474 + $0xc8] sm:$0xff] %v1171
        %1726 = vst [vmem:[%s474 + $0xd0] sm:$0xff] %v1176
        %1727 = vst [vmem:[%s474 + $0xd8] sm:$0xff] %v1181
        %1728 = vst [vmem:[%s474 + $0xe0] sm:$0xff] %v1186
        %1729 = vst [vmem:[%s474 + $0xe8] sm:$0xff] %v1191
        %1730 = vst [vmem:[%s474 + $0xf0] sm:$0xff] %v1196
        %1731 = vst [vmem:[%s474 + $0xf8] sm:$0xff] %v1201
        %1732 = vst [vmem:[%s481] sm:$0xff] %v1294
        %1733 = vst [vmem:[%s481 + $0x8] sm:$0xff] %v1299
        %1734 = vst [vmem:[%s481 + $0x10] sm:$0xff] %v1304
        %1735 = vst [vmem:[%s481 + $0x18] sm:$0xff] %v1309
        %1736 = vst [vmem:[%s481 + $0x20] sm:$0xff] %v1314
        %1737 = vst [vmem:[%s481 + $0x28] sm:$0xff] %v1319
        %1738 = vst [vmem:[%s481 + $0x30] sm:$0xff] %v1324
        %1739 = vst [vmem:[%s481 + $0x38] sm:$0xff] %v1329
        %1740 = vst [vmem:[%s481 + $0x40] sm:$0xff] %v1334
        %1741 = vst [vmem:[%s481 + $0x48] sm:$0xff] %v1339
        %1742 = vst [vmem:[%s481 + $0x50] sm:$0xff] %v1344
        %1743 = vst [vmem:[%s481 + $0x58] sm:$0xff] %v1349
        %1744 = vst [vmem:[%s481 + $0x60] sm:$0xff] %v1354
        %1745 = vst [vmem:[%s481 + $0x68] sm:$0xff] %v1359
        %1746 = vst [vmem:[%s481 + $0x70] sm:$0xff] %v1364
        %1747 = vst [vmem:[%s481 + $0x78] sm:$0xff] %v1369
        %1748 = vst [vmem:[%s481 + $0x80] sm:$0xff] %v1374
        %1749 = vst [vmem:[%s481 + $0x88] sm:$0xff] %v1379
        %1750 = vst [vmem:[%s481 + $0x90] sm:$0xff] %v1384
        %1751 = vst [vmem:[%s481 + $0x98] sm:$0xff] %v1389
        %1752 = vst [vmem:[%s481 + $0xa0] sm:$0xff] %v1394
        %1753 = vst [vmem:[%s481 + $0xa8] sm:$0xff] %v1399
        %1754 = vst [vmem:[%s481 + $0xb0] sm:$0xff] %v1404
        %1755 = vst [vmem:[%s481 + $0xb8] sm:$0xff] %v1409
        %1756 = vst [vmem:[%s481 + $0xc0] sm:$0xff] %v1414
        %1757 = vst [vmem:[%s481 + $0xc8] sm:$0xff] %v1419
        %1758 = vst [vmem:[%s481 + $0xd0] sm:$0xff] %v1424
        %1759 = vst [vmem:[%s481 + $0xd8] sm:$0xff] %v1429
        %1760 = vst [vmem:[%s481 + $0xe0] sm:$0xff] %v1434
        %1761 = vst [vmem:[%s481 + $0xe8] sm:$0xff] %v1439
        %1762 = vst [vmem:[%s481 + $0xf0] sm:$0xff] %v1444
        %1763 = vst [vmem:[%s481 + $0xf8] sm:$0xff] %v1449
        %1764 = vst [vmem:[%s488] sm:$0xff] %v1542
        %1765 = vst [vmem:[%s488 + $0x8] sm:$0xff] %v1547
        %1766 = vst [vmem:[%s488 + $0x10] sm:$0xff] %v1552
        %1767 = vst [vmem:[%s488 + $0x18] sm:$0xff] %v1557
        %1768 = vst [vmem:[%s488 + $0x20] sm:$0xff] %v1562
        %1769 = vst [vmem:[%s488 + $0x28] sm:$0xff] %v1567
        %1770 = vst [vmem:[%s488 + $0x30] sm:$0xff] %v1572
        %1771 = vst [vmem:[%s488 + $0x38] sm:$0xff] %v1577
        %1772 = vst [vmem:[%s488 + $0x40] sm:$0xff] %v1582
        %1773 = vst [vmem:[%s488 + $0x48] sm:$0xff] %v1587
        %1774 = vst [vmem:[%s488 + $0x50] sm:$0xff] %v1592
        %1775 = vst [vmem:[%s488 + $0x58] sm:$0xff] %v1597
        %1776 = vst [vmem:[%s488 + $0x60] sm:$0xff] %v1602
        %1777 = vst [vmem:[%s488 + $0x68] sm:$0xff] %v1607
        %1778 = vst [vmem:[%s488 + $0x70] sm:$0xff] %v1612
        %1779 = vst [vmem:[%s488 + $0x78] sm:$0xff] %v1617
        %1780 = vst [vmem:[%s488 + $0x80] sm:$0xff] %v1622
        %1781 = vst [vmem:[%s488 + $0x88] sm:$0xff] %v1627
        %1782 = vst [vmem:[%s488 + $0x90] sm:$0xff] %v1632
        %1783 = vst [vmem:[%s488 + $0x98] sm:$0xff] %v1637
        %1784 = vst [vmem:[%s488 + $0xa0] sm:$0xff] %v1642
        %1785 = vst [vmem:[%s488 + $0xa8] sm:$0xff] %v1647
        %1786 = vst [vmem:[%s488 + $0xb0] sm:$0xff] %v1652
        %1787 = vst [vmem:[%s488 + $0xb8] sm:$0xff] %v1657
        %1788 = vst [vmem:[%s488 + $0xc0] sm:$0xff] %v1662
        %1789 = vst [vmem:[%s488 + $0xc8] sm:$0xff] %v1667
        %1790 = vst [vmem:[%s488 + $0xd0] sm:$0xff] %v1672
        %1791 = vst [vmem:[%s488 + $0xd8] sm:$0xff] %v1677
        %1792 = vst [vmem:[%s488 + $0xe0] sm:$0xff] %v1682
        %1793 = vst [vmem:[%s488 + $0xe8] sm:$0xff] %v1687
        %1794 = vst [vmem:[%s488 + $0xf0] sm:$0xff] %v1692
        %1795 = vst [vmem:[%s488 + $0xf8] sm:$0xff] %v1697
        %s1796 = sand.u32 %s252, 1
        %s1797 = scalar_lea.sflag [#allocation4], %s1796
        %s1798 = sand.u32 %s252, 1
        %s1799 = smul.addr %s1798, 256
        %s1800 = scalar_lea.vmem [#allocation10], %s1799
        %s1801 = sand.u32 %s34, 1
        %s1802 = scalar_lea.sflag [#allocation12], %s1801
        %s1803 = sand.u32 %s280, 1
        %s1804 = smul.addr %s1803, 256
        %s1805 = scalar_lea.vmem [#allocation11], %s1804
        %s1806 = sand.u32 %s34, 1
        %s1807 = scalar_lea.sflag [#allocation12], %s1806
        %s1808 = sand.u32 %s308, 1
        %s1809 = smul.addr %s1808, 256
        %s1810 = scalar_lea.vmem [#allocation13], %s1809
        // Predicated region
        $region73: #{tpu_custom_call.1} parent=55 // pred_check
          %p1811 = pneg %p262
        $region74: #{tpu_custom_call.1} parent=55 // pred_check_branch
          %1813 = sbr.rel (%p1811) target = $region76
        $region75: #{tpu_custom_call.1} parent=55 // pred_region
          %s1814 = smul.u32 32, %s39
          %s1816 = ssub.s32 4096, 4096
          %1817 = vsyncadd %s1797, %s1816
          %s1818 = smul.addr %s38, 32
          %s1819 = sadd.s32 %s1814, %s1818
          %s1820 = smul.addr %s1819, 128
          %s1821 = scalar_lea.hbm %s9, %s1820
          %s1822 = sshll.u32 %s1800, 4
          %s1823 = int_to_ptr.vmem [resolvable:$true] %s1822
          %1828 = dma.vmem_to_hbm [thread:$0]  %s1823, 4096, %s1821, %s1797, 128, 128, 8
        $region76: #{tpu_custom_call.1} parent=55 // pred_fallthru
          _
        // Predicated region
        $region77: #{tpu_custom_call.1} parent=55 // pred_check
          %p1829 = pneg %p290
        $region78: #{tpu_custom_call.1} parent=55 // pred_check_branch
          %1831 = sbr.rel (%p1829) target = $region80
        $region79: #{tpu_custom_call.1} parent=55 // pred_region
          %s1832 = smul.u32 32, %s39
          %s1834 = ssub.s32 4096, 4096
          %1835 = vsyncadd %s1802, %s1834
          %s1836 = smul.addr %s38, 32
          %s1837 = sadd.s32 %s1832, %s1836
          %s1838 = smul.addr %s1837, 128
          %s1839 = scalar_lea.hbm %s10, %s1838
          %s1840 = sshll.u32 %s1805, 4
          %s1841 = int_to_ptr.vmem [resolvable:$true] %s1840
          %1846 = dma.vmem_to_hbm [thread:$0]  %s1841, 4096, %s1839, %s1802, 128, 128, 8
        $region80: #{tpu_custom_call.1} parent=55 // pred_fallthru
          _
        // Predicated region
        $region81: #{tpu_custom_call.1} parent=55 // pred_check
          %p1847 = pneg %p318
        $region82: #{tpu_custom_call.1} parent=55 // pred_check_branch
          %1849 = sbr.rel (%p1847) target = $region84
        $region83: #{tpu_custom_call.1} parent=55 // pred_region
          %s1850 = smul.u32 32, %s39
          %s1852 = ssub.s32 4096, 4096
          %1853 = vsyncadd %s1807, %s1852
          %s1854 = smul.addr %s38, 32
          %s1855 = sadd.s32 %s1850, %s1854
          %s1856 = smul.addr %s1855, 128
          %s1857 = scalar_lea.hbm %s11, %s1856
          %s1858 = sshll.u32 %s1810, 4
          %s1859 = int_to_ptr.vmem [resolvable:$true] %s1858
          %1864 = dma.vmem_to_hbm [thread:$0]  %s1859, 4096, %s1857, %s1807, 128, 128, 8
        $region84: #{tpu_custom_call.1} parent=55 // pred_fallthru
          _
      $region56: #{tpu_custom_call.1} parent=5 // pred_fallthru
        _
      %p1865 = scmp.le.s32.totalorder 2, %s29
      // Predicated region
      $region85: #{tpu_custom_call.1} parent=5 // pred_check
        %p1866 = pneg %p1865
      $region86: #{tpu_custom_call.1} parent=5 // pred_check_branch
        %1868 = sbr.rel (%p1866) target = $region88
      $region87: #{tpu_custom_call.1} parent=5 // pred_region
        %s1869 = ssub.s32 %s29, 2
        // Predicated region
        $region89: #{tpu_custom_call.1} parent=87 // pred_check
          %p1870 = pneg %p268
        $region90: #{tpu_custom_call.1} parent=87 // pred_check_branch
          %1872 = sbr.rel (%p1870) target = $region92
        $region91: #{tpu_custom_call.1} parent=87 // pred_region
          %s1873 = sand.u32 %s253, 1
          %s1874 = scalar_lea.sflag [#allocation4], %s1873
          %s1875 = sand.u32 %s253, 1
          %s1876 = smul.addr %s1875, 256
          %s1877 = scalar_lea.vmem [#allocation10], %s1876
          %1878 = dma.done %s1874, 4096
        $region92: #{tpu_custom_call.1} parent=87 // pred_fallthru
          _
        // Predicated region
        $region93: #{tpu_custom_call.1} parent=87 // pred_check
          %p1879 = pneg %p296
        $region94: #{tpu_custom_call.1} parent=87 // pred_check_branch
          %1881 = sbr.rel (%p1879) target = $region96
        $region95: #{tpu_custom_call.1} parent=87 // pred_region
          %s1882 = sand.u32 %s35, 1
          %s1883 = scalar_lea.sflag [#allocation12], %s1882
          %s1884 = sand.u32 %s281, 1
          %s1885 = smul.addr %s1884, 256
          %s1886 = scalar_lea.vmem [#allocation11], %s1885
          %1887 = dma.done %s1883, 4096
        $region96: #{tpu_custom_call.1} parent=87 // pred_fallthru
          _
        // Predicated region
        $region97: #{tpu_custom_call.1} parent=87 // pred_check
          %p1888 = pneg %p324
        $region98: #{tpu_custom_call.1} parent=87 // pred_check_branch
          %1890 = sbr.rel (%p1888) target = $region100
        $region99: #{tpu_custom_call.1} parent=87 // pred_region
          %s1891 = sand.u32 %s35, 1
          %s1892 = scalar_lea.sflag [#allocation12], %s1891
          %s1893 = sand.u32 %s309, 1
          %s1894 = smul.addr %s1893, 256
          %s1895 = scalar_lea.vmem [#allocation13], %s1894
          %1896 = dma.done %s1892, 4096
        $region100: #{tpu_custom_call.1} parent=87 // pred_fallthru
          _
      $region88: #{tpu_custom_call.1} parent=5 // pred_fallthru
        _
    $region6: #{tpu_custom_call.1} parent=1 // loop_footer
      %s33 = sadd.s32 1, %s29
    $region7: #{tpu_custom_call.1} parent=1 // loop_footer_branch
      %28 = sbr.rel target = $region3
    $region8: #{tpu_custom_call.1} parent=1 // loop_exit
      _
    %1897 = vsyncpa [#allocation3], 1
    %s1898 = scalar_lea.sflag [#allocation3], 1
    %1899 = vsyncpa %s1898, 1
    %1900 = vsyncpa [#allocation6], 1
    %1901 = vsyncpa [#allocation9], 1
    %1902 = vsyncpa [#allocation4], 1
    %s1903 = scalar_lea.sflag [#allocation4], 1
    %1904 = vsyncpa %s1903, 1
    %1905 = vsyncpa [#allocation12], 1
    %s1906 = scalar_lea.sflag [#allocation12], 1
    %1907 = vsyncpa %s1906, 1

</llo_original>
